<compile_context>
chip_gen: v5e
topology: v5e:2x2
jax: 0.10.0
libtpu: 0.0.40
codegen_flags: <defaults>
</compile_context>

<pallas_src>
import math
import numpy as np
import jax
import jax.numpy as jnp
from jax.experimental import pallas as pl
from jax.experimental.pallas import tpu as pltpu

_SLOPE = 0.2
_GAIN = float(np.sqrt(2.0))


# ----------------------------------------------------------------------------
# Filter design (numpy re-implementation of scipy.signal.firwin w/ Kaiser win)
# ----------------------------------------------------------------------------
def _kaiser_atten(numtaps, width):
    return 2.285 * (numtaps - 1) * np.pi * width + 7.95


def _kaiser_beta(a):
    if a > 50:
        return 0.1102 * (a - 8.7)
    if a > 21:
        return 0.5842 * (a - 21) ** 0.4 + 0.07886 * (a - 21)
    return 0.0


def design_lowpass_filter(numtaps, cutoff, width, fs):
    """Separable (non-radial) low-pass FIR taps, matching firwin semantics."""
    assert numtaps >= 1
    if numtaps == 1:
        return None
    nyq = 0.5 * fs
    cutoff_n = cutoff / nyq
    beta = _kaiser_beta(_kaiser_atten(numtaps, width / nyq))
    m = np.arange(numtaps) - 0.5 * (numtaps - 1)
    h = cutoff_n * np.sinc(cutoff_n * m)
    h *= np.kaiser(numtaps, beta)
    h /= np.sum(h)
    return h.astype(np.float32)


# ----------------------------------------------------------------------------
# upfirdn (1-D): numpy reference and dense [L_in, L_out] linear map
# ----------------------------------------------------------------------------
def upfirdn1d_np(x, f, up, down, p0, p1, axis):
    """Numpy reference: zero-stuff upsample -> pad/crop -> true conv -> decimate."""
    x = np.moveaxis(np.asarray(x, np.float64), axis, -1)
    lead, L = x.shape[:-1], x.shape[-1]
    z = np.zeros(lead + (L * up,), np.float64)
    z[..., ::up] = x
    z = np.pad(z, [(0, 0)] * len(lead) + [(max(p0, 0), max(p1, 0))])
    if p0 < 0:
        z = z[..., -p0:]
    if p1 < 0:
        z = z[..., :p1]
    f = np.asarray(f, np.float64)
    T = len(f)
    L_conv = z.shape[-1] - T + 1
    out = np.zeros(lead + (L_conv,), np.float64)
    for t in range(T):
        out += f[T - 1 - t] * z[..., t:t + L_conv]
    return np.moveaxis(out[..., ::down], -1, axis)


def upfirdn1d_matrix(L_in, f, up, down, pad0, pad1):
    """Same op as a dense [L_in, L_out] matrix (true convolution, handles negative pads)."""
    f = np.asarray(f, np.float64)
    T = len(f)
    L_pad = L_in * up + pad0 + pad1
    L_conv = L_pad - T + 1
    L_out = -(-L_conv // down)
    M = np.zeros((L_in, L_out), np.float64)
    for i in range(L_in):
        k = pad0 + i * up  # position of x[i] in the zero-stuffed / padded / cropped signal
        if not (0 <= k < L_pad):
            continue
        for o in range(L_out):
            t = k - o * down
            if 0 <= t < T:
                M[i, o] = f[T - 1 - t]  # filter flipped -> true convolution
    return M.astype(np.float32)


def block_diag(m, reps):
    """reps copies of m on the diagonal -> per-channel FIR with channels in lanes."""
    li, lo = m.shape
    out = np.zeros((reps * li, reps * lo), m.dtype)
    for r in range(reps):
        out[r * li:(r + 1) * li, r * lo:(r + 1) * lo] = m
    return out


# ----------------------------------------------------------------------------
# Generation-aware sizing helpers
# ----------------------------------------------------------------------------
def _vmem_limit_and_budget():
    """One per-generation figure drives both vmem_limit_bytes and the block budget."""
    cap = 64 * 1024 * 1024  # assume v7x (tightest generation, 64 MiB/TC) if query fails
    try:
        info = pltpu.get_tpu_info()
        cap = int(getattr(info, "vmem_capacity_bytes", cap))
    except Exception:
        pass
    limit = max(32 * 1024 * 1024, min(cap * 3 // 4, 100 * 1024 * 1024))
    budget = int(limit * 0.7)  # headroom for Mosaic temporaries / relayouts
    return limit, budget


def _mxu_lane_cap():
    """Cap on c_blk*W_mid so the block-diag W-FIR stays within one MXU tile."""
    try:
        kind = jax.devices()[0].device_kind.lower()
    except Exception:
        return 256
    if "v5 lite" in kind or "v5e" in kind or "v5lite" in kind:
        return 128   # v5e MXU is 4x128^2
    return 256       # v6e / v7x MXU is 2x256^2


def _step_vmem_bytes(n_blk, c_blk, H_in, W_in, H_mid, W_mid, H_out, W_out,
                     fir_itemsize, fir_buffers):
    """Estimated VMEM working set for one grid step (f32 I/O, bf16 FIR operands)."""
    f32 = 4
    per_img = (2 * H_in * c_blk * W_in * f32                     # double-buffered input
               + 2 * H_out * c_blk * W_out * f32                 # double-buffered output
               + 2 * H_mid * c_blk * W_mid * (f32 + fir_itemsize))  # f32 + cast intermediates
    fixed = (2 * c_blk * W_in * f32                              # bias row (double buffered)
             + fir_buffers * fir_itemsize * (
                 (c_blk * W_in) * (c_blk * W_mid)                # block-diag up W-FIR
                 + (c_blk * W_mid) * (c_blk * W_out)             # block-diag down W-FIR
                 + H_mid * H_in + H_out * H_mid))                # shared H-FIRs
    return fixed + n_blk * per_img


def choose_channel_block(C, W_in, W_mid, W_out, H_in, H_mid, H_out,
                         fir_itemsize, vmem_budget_bytes, mxu_lane_cap):
    """Smallest lane-dense channel block (c_blk*W_out % 128 == 0), grown only while
    it still fits one MXU tile and the VMEM budget."""
    c_min = 128 // math.gcd(128, W_out)   # lane-dense output requirement

    def fits(cb):
        return _step_vmem_bytes(1, cb, H_in, W_in, H_mid, W_mid, H_out, W_out,
                                fir_itemsize, fir_buffers=1) <= vmem_budget_bytes

    if not fits(c_min):
        # TODO(synk): minimal lane-dense block overflows VMEM for this shape; fall back
        # to the largest fitting block (output stores become masked sub-128-lane vst.msk).
        best = 1
        for cb in range(1, c_min):
            if fits(cb):
                best = cb
        return best

    cb = c_min
    while True:
        nxt = cb + c_min
        if nxt > max(C, c_min):            # padding beyond real channels is pure waste
            break
        if nxt * W_mid > mxu_lane_cap:     # keep block-diag within one MXU tile
            break
        if not fits(nxt):
            break
        cb = nxt
    return cb


# ----------------------------------------------------------------------------
# Pallas kernel: bias + upsample FIR + leaky-relu (gain folded) + downsample FIR
# ----------------------------------------------------------------------------
def _filtered_lrelu_kernel(x_ref, b_ref, awd_ref, aht_ref, bht_ref, bwd_ref, o_ref):
    """One (batch-block, channel-block) grid step on lane-interleaved slabs.

    x_ref  : [N_BLK, 1, H_in,  C_BLK*W_in ]  channel-interleaved input slab (f32)
    b_ref  : [1, 1, C_BLK*W_in]              per-channel bias tiled along lanes (f32)
    awd_ref: [C_BLK*W_in,  C_BLK*W_mid]      block-diag up-FIR, W axis (bf16, resident)
    aht_ref: [H_mid, H_in]                   up-FIR, H axis (transposed, bf16, resident)
    bht_ref: [H_out, H_mid]                  down-FIR, H axis (sqrt(2) folded, resident)
    bwd_ref: [C_BLK*W_mid, C_BLK*W_out]      block-diag down-FIR, W axis (bf16, resident)
    o_ref  : [N_BLK, 1, H_out, C_BLK*W_out]  lane-dense output slab (f32)
    """
    mxu_dtype = awd_ref.dtype
    # Statically unrolled loop over the batch block (FIR operands shared / resident).
    for n in range(x_ref.shape[0]):
        # Bias add in f32 (pre-tiled [1, C*W_in] row broadcast over H_in sublanes).
        x = x_ref[n, 0] + b_ref[0]
        # Up-sampling FIR: W axis then H axis (MXU matmuls, f32 accumulation).
        y = jnp.dot(x.astype(mxu_dtype), awd_ref[...],
                    preferred_element_type=jnp.float32)             # [H_in,  C*W_mid]
        y = jnp.dot(aht_ref[...], y.astype(mxu_dtype),
                    preferred_element_type=jnp.float32)             # [H_mid, C*W_mid]
        # Leaky ReLU in f32; the sqrt(2) gain is folded into bht_ref.
        y = jnp.where(y >= 0.0, y, _SLOPE * y)
        # Down-sampling FIR: H axis then W axis.
        z = jnp.dot(bht_ref[...], y.astype(mxu_dtype),
                    preferred_element_type=jnp.float32)             # [H_out, C*W_mid]
        z = jnp.dot(z.astype(mxu_dtype), bwd_ref[...],
                    preferred_element_type=jnp.float32)             # [H_out, C*W_out]
        o_ref[n, 0] = z.astype(o_ref.dtype)


def filtered_lrelu_pallas(x, bias, awd, aht, bht_g, bwd, c_blk, n_blk,
                          vmem_limit_bytes, buffered_firs=True):
    N, C_pad, H_in, W_in = x.shape
    assert C_pad % c_blk == 0 and bias.shape == (C_pad,)
    assert N % n_blk == 0
    CB = C_pad // c_blk
    H_mid = aht.shape[0]
    H_out = bht_g.shape[0]
    CW_in = c_blk * W_in
    CW_mid = awd.shape[1]
    CW_out = bwd.shape[1]
    W_out = CW_out // c_blk

    # ---- layout plumbing (wrapper, outside the kernel): channels -> lanes ----
    # TODO(synk): keep this lane-interleaved layout across consecutive LReLu/conv layers
    # instead of round-tripping NCHW each call; the transposes are full HBM passes.
    x_r = (x.reshape(N, CB, c_blk, H_in, W_in)
            .transpose(0, 1, 3, 2, 4)
            .reshape(N, CB, H_in, CW_in))
    b_r = jnp.repeat(bias.reshape(CB, c_blk, 1), W_in, axis=2).reshape(CB, 1, CW_in)

    # Resident FIR matrices: constant block index -> DMA'd once.  Request single
    # buffering (they never change); caller falls back if Buffered(1) is rejected.
    if buffered_firs:
        def fir_spec(shape):
            return pl.BlockSpec(shape, lambda n, cb: (0, 0), pipeline_mode=pl.Buffered(1))
    else:
        def fir_spec(shape):
            return pl.BlockSpec(shape, lambda n, cb: (0, 0))

    fir_itemsize = np.dtype(awd.dtype).itemsize
    flops = int(2 * N * CB * (H_in * CW_in * CW_mid
                              + H_mid * H_in * CW_mid
                              + H_out * H_mid * CW_mid
                              + H_out * CW_mid * CW_out))
    bytes_accessed = int(x_r.size * 4 + N * CB * H_out * CW_out * 4 + b_r.size * 4
                         + (awd.size + aht.size + bht_g.size + bwd.size) * fir_itemsize)

    out = pl.pallas_call(
        _filtered_lrelu_kernel,
        out_shape=jax.ShapeDtypeStruct((N, CB, H_out, CW_out), jnp.float32),
        grid=(N // n_blk, CB),
        in_specs=[
            pl.BlockSpec((n_blk, 1, H_in, CW_in), lambda n, cb: (n, cb, 0, 0)),
            pl.BlockSpec((1, 1, CW_in), lambda n, cb: (cb, 0, 0)),
            fir_spec(awd.shape),
            fir_spec(aht.shape),
            fir_spec(bht_g.shape),
            fir_spec(bwd.shape),
        ],
        out_specs=pl.BlockSpec((n_blk, 1, H_out, CW_out), lambda n, cb: (n, cb, 0, 0)),
        compiler_params=pltpu.CompilerParams(
            dimension_semantics=("parallel", "parallel"),   # v7x: both TCs get work
            vmem_limit_bytes=int(vmem_limit_bytes)),
        cost_estimate=pl.CostEstimate(flops=flops, transcendentals=0,
                                      bytes_accessed=bytes_accessed),
    )(x_r, b_r, awd, aht, bht_g, bwd)

    # ---- un-interleave lanes back to NCHW (padded channels still attached) ----
    y = (out.reshape(N, CB, H_out, c_blk, W_out)
            .transpose(0, 1, 3, 2, 4)
            .reshape(N, C_pad, H_out, W_out))
    return y


# ----------------------------------------------------------------------------
# Module mirror of LReLu.__init__ / forward
# ----------------------------------------------------------------------------
class LReLuPallas:
    def __init__(self, in_channels, out_channels, in_size, out_size,
                 in_sampling_rate, out_sampling_rate, in_cutoff, out_cutoff,
                 in_half_width, out_half_width, filter_size=6,
                 lrelu_upsampling=2, is_critically_sampled=False,
                 use_radial_filters=False, filter_dtype=jnp.bfloat16):
        self.in_channels = in_channels
        self.out_channels = out_channels
        self.in_size = np.broadcast_to(np.asarray(in_size), [2]).astype(np.int64)
        self.out_size = np.broadcast_to(np.asarray(out_size), [2]).astype(np.int64)
        tmp_sr = max(in_sampling_rate, out_sampling_rate) * lrelu_upsampling

        self.up_factor = int(np.rint(tmp_sr / in_sampling_rate))
        self.up_taps = filter_size * self.up_factor if self.up_factor > 1 else 1
        self.up_filter = design_lowpass_filter(self.up_taps, in_cutoff,
                                               in_half_width * 2, tmp_sr)

        self.down_factor = int(np.rint(tmp_sr / out_sampling_rate))
        self.down_taps = filter_size * self.down_factor if self.down_factor > 1 else 1
        # TODO(synk): radial (jinc) down-filter variant (use_radial_filters=True and
        # not critically sampled) is not implemented; separable path only.
        self.down_filter = design_lowpass_filter(self.down_taps, out_cutoff,
                                                 out_half_width * 2, tmp_sr)

        pad_total = (self.out_size - 1) * self.down_factor + 1
        pad_total = pad_total - self.in_size * self.up_factor
        pad_total = pad_total + self.up_taps + self.down_taps - 2
        pad_lo = (pad_total + self.up_factor) // 2
        pad_hi = pad_total - pad_lo
        self.padding = [int(pad_lo[0]), int(pad_hi[0]), int(pad_lo[1]), int(pad_hi[1])]

        # Parameter init: torch.zeros([out_channels]) -> deterministic zeros.
        self.bias = jnp.zeros((out_channels,), jnp.float32)

        # ---- Build the separable FIR resampling matrices (host-side glue). ----
        fu = self.up_filter if self.up_filter is not None else np.ones([1], np.float32)
        fd = self.down_filter if self.down_filter is not None else np.ones([1], np.float32)
        fu_g = fu * self.up_factor  # upfirdn gain = up**2, split over the 2 axes
        padx0, padx1, pady0, pady1 = self.padding
        W_in, H_in = int(self.in_size[0]), int(self.in_size[1])
        W_out, H_out = int(self.out_size[0]), int(self.out_size[1])

        Aw = upfirdn1d_matrix(W_in, fu_g, self.up_factor, 1, padx0, padx1)   # [W_in , W_mid]
        Ah = upfirdn1d_matrix(H_in, fu_g, self.up_factor, 1, pady0, pady1)   # [H_in , H_mid]
        Bw = upfirdn1d_matrix(Aw.shape[1], fd, 1, self.down_factor, 0, 0)    # [W_mid, W_out]
        Bh = upfirdn1d_matrix(Ah.shape[1], fd, 1, self.down_factor, 0, 0)    # [H_mid, H_out]
        assert Bw.shape[1] == W_out and Bh.shape[1] == H_out
        W_mid, H_mid = Aw.shape[1], Ah.shape[1]
        self._dims = (H_in, W_in, H_mid, W_mid, H_out, W_out)

        # ---- Generation-aware sizing: one figure drives limit and budget. ----
        self.vmem_limit, self._vmem_budget = _vmem_limit_and_budget()
        self._fir_itemsize = np.dtype(filter_dtype).itemsize
        self.c_blk = choose_channel_block(out_channels, W_in, W_mid, W_out,
                                          H_in, H_mid, H_out, self._fir_itemsize,
                                          self._vmem_budget, _mxu_lane_cap())
        # Pad channels up to a multiple of c_blk so the output slab is lane-dense
        # (c_blk*W_out a multiple of 128); padded channels are zero and sliced off.
        self.c_pad = -(-out_channels // self.c_blk) * self.c_blk

        # Fold the sqrt(2) lrelu gain into the H-axis down filter (no in-kernel
        # full-width VPU multiply).  Block-diagonal W-axis filters keep channels
        # interleaved in the lane dimension -> zero in-kernel transposes.
        # TODO(synk): bf16 FIR taps degrade Kaiser stop-band attenuation; pass
        # filter_dtype=jnp.float32 if anti-aliasing quality matters more than speed.
        # TODO(synk): at large in_size the dense FIR matrices waste MXU flops on
        # structural zeros (bandwidth ~taps); switch to banded tiling when MXU-bound.
        self.AwD = jnp.asarray(block_diag(Aw, self.c_blk), filter_dtype)
        self.AhT = jnp.asarray(Ah.T, filter_dtype)
        self.BhTg = jnp.asarray(Bh.T * _GAIN, filter_dtype)
        self.BwD = jnp.asarray(block_diag(Bw, self.c_blk), filter_dtype)

        self._fir_buffered = None   # resolved on first call (Buffered(1) or fallback)

    def _choose_batch_block(self, N, CB):
        """Largest batch block that fits VMEM while keeping >=2 grid steps (megacore)."""
        H_in, W_in, H_mid, W_mid, H_out, W_out = self._dims
        fixed = _step_vmem_bytes(0, self.c_blk, H_in, W_in, H_mid, W_mid, H_out, W_out,
                                 self._fir_itemsize, fir_buffers=1)
        per_img = _step_vmem_bytes(1, self.c_blk, H_in, W_in, H_mid, W_mid, H_out, W_out,
                                   self._fir_itemsize, fir_buffers=1) - fixed
        best = 1
        for nb in range(1, N + 1):
            if N % nb:
                continue
            if N * CB >= 2 and (N // nb) * CB < 2:
                continue  # keep both v7x TensorCores busy
            if fixed + nb * per_img > self._vmem_budget:
                continue
            best = nb
        return best

    def __call__(self, x):
        assert x.dtype == jnp.float32
        N, C, H, W = x.shape
        # bias is per *output* channel and filtered_lrelu applies it to x's
        # channels, so we require in_channels == out_channels == x.shape[1].
        assert C == self.out_channels == self.in_channels, \
            "filtered_lrelu bias requires in_channels == out_channels == x.shape[1]"
        assert (W, H) == (int(self.in_size[0]), int(self.in_size[1]))

        bias = self.bias
        if self.c_pad != C:
            x = jnp.pad(x, ((0, 0), (0, self.c_pad - C), (0, 0), (0, 0)))
            bias = jnp.pad(bias, (0, self.c_pad - C))
        CB = self.c_pad // self.c_blk
        n_blk = self._choose_batch_block(N, CB)

        args = (x, bias, self.AwD, self.AhT, self.BhTg, self.BwD,
                self.c_blk, n_blk, self.vmem_limit)
        if self._fir_buffered is None:
            try:
                y = filtered_lrelu_pallas(*args, buffered_firs=True)
                jax.block_until_ready(y)
                self._fir_buffered = True
            except Exception:
                # pipeline_mode=pl.Buffered(1) not supported here -> default buffering.
                self._fir_buffered = False
                y = filtered_lrelu_pallas(*args, buffered_firs=False)
        else:
            y = filtered_lrelu_pallas(*args, buffered_firs=self._fir_buffered)

        y = y[:, :self.out_channels]
        assert y.shape == (N, self.out_channels,
                           int(self.out_size[1]), int(self.out_size[0]))
        return y

    # Pure-numpy reference of the same forward semantics (for verification).
    def reference(self, x_np):
        fu = np.asarray(self.up_filter if self.up_filter is not None else [1.0], np.float64)
        fd = np.asarray(self.down_filter if self.down_filter is not None else [1.0], np.float64)
        fu_g = fu * self.up_factor
        padx0, padx1, pady0, pady1 = self.padding
        x = x_np.astype(np.float64) + np.asarray(self.bias)[None, :, None, None]
        x = upfirdn1d_np(x, fu_g, self.up_factor, 1, padx0, padx1, axis=3)
        x = upfirdn1d_np(x, fu_g, self.up_factor, 1, pady0, pady1, axis=2)
        x = np.where(x >= 0, x, _SLOPE * x) * _GAIN
        x = upfirdn1d_np(x, fd, 1, self.down_factor, 0, 0, axis=3)
        x = upfirdn1d_np(x, fd, 1, self.down_factor, 0, 0, axis=2)
        return x.astype(np.float32)


if __name__ == "__main__":
    # ---- host-side unit test: negative-padding branch of upfirdn1d_matrix ----
    rng = np.random.RandomState(1)
    sig = rng.randn(3, 20)
    f_t = design_lowpass_filter(8, 3.0, 2.0, 16)
    for (p0, p1) in [(-3, -2), (5, -4), (-1, 7)]:
        M = upfirdn1d_matrix(20, f_t, 2, 2, p0, p1)
        got = sig @ M
        ref = upfirdn1d_np(sig, f_t, 2, 2, p0, p1, axis=1)
        np.testing.assert_allclose(got, ref, rtol=1e-10, atol=1e-10)

    # ---- small CNO-style configuration ----
    in_channels = out_channels = 4
    in_size = out_size = 16
    in_sr = out_sr = 16
    cutoff_den = 2.0001
    half_width_mult = 0.8
    in_cutoff = in_size / cutoff_den
    out_cutoff = out_size / cutoff_den
    in_half_width = half_width_mult * in_size - in_size / cutoff_den
    out_half_width = half_width_mult * out_size - out_size / cutoff_den

    mod = LReLuPallas(in_channels, out_channels, in_size, out_size,
                      in_sr, out_sr, in_cutoff, out_cutoff,
                      in_half_width, out_half_width)

    key = jax.random.PRNGKey(0)
    x = jax.random.normal(key, (2, in_channels, in_size, in_size), dtype=jnp.float32)

    y = jax.block_until_ready(mod(x))

    y_ref = mod.reference(np.asarray(x))
    assert y.shape == y_ref.shape == (2, out_channels, out_size, out_size)
    # bf16 MXU operands with f32 accumulation, compared against a float64 reference.
    np.testing.assert_allclose(np.asarray(y), y_ref, rtol=5e-2, atol=5e-2)
    print("KERNEL_OK")
</pallas_src>

<mosaic_0001>
module attributes {stable_mosaic.version = 11 : i64} {
  func.func @_filtered_lrelu_kernel(%arg0: i32, %arg1: i32, %arg2: memref<1x1x16x128xf32, #tpu.memory_space<vmem>>, %arg3: memref<1x1x128xf32, #tpu.memory_space<vmem>>, %arg4: memref<128x336xbf16, #tpu.memory_space<vmem>>, %arg5: memref<42x16xbf16, #tpu.memory_space<vmem>>, %arg6: memref<16x42xbf16, #tpu.memory_space<vmem>>, %arg7: memref<336x128xbf16, #tpu.memory_space<vmem>>, %arg8: memref<1x1x16x128xf32, #tpu.memory_space<vmem>>) attributes {dimension_semantics = [#tpu.dimension_semantics<parallel>, #tpu.dimension_semantics<parallel>], iteration_bounds = array<i64: 2, 1>, scalar_prefetch = 0 : i64, scratch_operands = 0 : i64, tpu.core_type = #tpu.core_type<tc>, window_params = [{transform_indices = @transform_0, window_bounds = array<i64: 1, 1, 16, 128>}, {transform_indices = @transform_1, window_bounds = array<i64: 1, 1, 128>}, {pipeline_mode = #tpu.pipeline_mode<synchronous>, transform_indices = @transform_2, window_bounds = array<i64: 128, 336>}, {pipeline_mode = #tpu.pipeline_mode<synchronous>, transform_indices = @transform_3, window_bounds = array<i64: 42, 16>}, {pipeline_mode = #tpu.pipeline_mode<synchronous>, transform_indices = @transform_4, window_bounds = array<i64: 16, 42>}, {pipeline_mode = #tpu.pipeline_mode<synchronous>, transform_indices = @transform_5, window_bounds = array<i64: 336, 128>}, {transform_indices = @transform_6, window_bounds = array<i64: 1, 1, 16, 128>}]} {
    %c0 = arith.constant 0 : index
    %c0_0 = arith.constant 0 : index
    %c0_1 = arith.constant 0 : index
    %c0_2 = arith.constant 0 : index
    %0 = vector.load %arg2[%c0, %c0_0, %c0_1, %c0_2] : memref<1x1x16x128xf32, #tpu.memory_space<vmem>>, vector<1x1x16x128xf32>
    %1 = vector.shape_cast %0 : vector<1x1x16x128xf32> to vector<16x128xf32>
    %c0_3 = arith.constant 0 : index
    %c0_4 = arith.constant 0 : index
    %c0_5 = arith.constant 0 : index
    %2 = vector.load %arg3[%c0_3, %c0_4, %c0_5] : memref<1x1x128xf32, #tpu.memory_space<vmem>>, vector<1x1x128xf32>
    %3 = vector.shape_cast %2 : vector<1x1x128xf32> to vector<1x128xf32>
    %4 = vector.broadcast %3 : vector<1x128xf32> to vector<16x128xf32>
    %5 = arith.addf %1, %4 : vector<16x128xf32>
    %6 = arith.truncf %5 : vector<16x128xf32> to vector<16x128xbf16>
    %c0_6 = arith.constant 0 : index
    %c0_7 = arith.constant 0 : index
    %7 = vector.load %arg4[%c0_6, %c0_7] : memref<128x336xbf16, #tpu.memory_space<vmem>>, vector<128x336xbf16>
    %cst = arith.constant dense<0.000000e+00> : vector<16x336xf32>
    %8 = tpu.matmul %6, %7, %cst {dimension_numbers = #tpu.dot_dimension_numbers<[1], [0], [0], [1], [0, 0, 1, 1], [], []>} : vector<16x128xbf16>, vector<128x336xbf16>, vector<16x336xf32> -> vector<16x336xf32>
    %c0_8 = arith.constant 0 : index
    %c0_9 = arith.constant 0 : index
    %9 = vector.load %arg5[%c0_8, %c0_9] : memref<42x16xbf16, #tpu.memory_space<vmem>>, vector<42x16xbf16>
    %10 = arith.truncf %8 : vector<16x336xf32> to vector<16x336xbf16>
    %cst_10 = arith.constant dense<0.000000e+00> : vector<42x336xf32>
    %11 = tpu.matmul %9, %10, %cst_10 {dimension_numbers = #tpu.dot_dimension_numbers<[1], [0], [0], [1], [0, 0, 1, 1], [], []>} : vector<42x16xbf16>, vector<16x336xbf16>, vector<42x336xf32> -> vector<42x336xf32>
    %cst_11 = arith.constant 0.000000e+00 : f32
    %12 = vector.broadcast %cst_11 : f32 to vector<42x336xf32>
    %13 = arith.cmpf oge, %11, %12 : vector<42x336xf32>
    %cst_12 = arith.constant 2.000000e-01 : f32
    %14 = vector.broadcast %cst_12 : f32 to vector<42x336xf32>
    %15 = arith.mulf %14, %11 : vector<42x336xf32>
    %16 = arith.select %13, %11, %15 : vector<42x336xi1>, vector<42x336xf32>
    %c0_13 = arith.constant 0 : index
    %c0_14 = arith.constant 0 : index
    %17 = vector.load %arg6[%c0_13, %c0_14] : memref<16x42xbf16, #tpu.memory_space<vmem>>, vector<16x42xbf16>
    %18 = arith.truncf %16 : vector<42x336xf32> to vector<42x336xbf16>
    %cst_15 = arith.constant dense<0.000000e+00> : vector<16x336xf32>
    %19 = tpu.matmul %17, %18, %cst_15 {dimension_numbers = #tpu.dot_dimension_numbers<[1], [0], [0], [1], [0, 0, 1, 1], [], []>} : vector<16x42xbf16>, vector<42x336xbf16>, vector<16x336xf32> -> vector<16x336xf32>
    %20 = arith.truncf %19 : vector<16x336xf32> to vector<16x336xbf16>
    %c0_16 = arith.constant 0 : index
    %c0_17 = arith.constant 0 : index
    %21 = vector.load %arg7[%c0_16, %c0_17] : memref<336x128xbf16, #tpu.memory_space<vmem>>, vector<336x128xbf16>
    %cst_18 = arith.constant dense<0.000000e+00> : vector<16x128xf32>
    %22 = tpu.matmul %20, %21, %cst_18 {dimension_numbers = #tpu.dot_dimension_numbers<[1], [0], [0], [1], [0, 0, 1, 1], [], []>} : vector<16x336xbf16>, vector<336x128xbf16>, vector<16x128xf32> -> vector<16x128xf32>
    %c0_19 = arith.constant 0 : index
    %c0_20 = arith.constant 0 : index
    %c0_21 = arith.constant 0 : index
    %c0_22 = arith.constant 0 : index
    %23 = vector.load %arg8[%c0_19, %c0_20, %c0_21, %c0_22] : memref<1x1x16x128xf32, #tpu.memory_space<vmem>>, vector<1x1x16x128xf32>
    %24 = vector.shape_cast %23 : vector<1x1x16x128xf32> to vector<16x128xf32>
    %25 = vector.shape_cast %22 : vector<16x128xf32> to vector<1x1x16x128xf32>
    tpu.vector_store %arg8[%c0_19, %c0_20, %c0_21, %c0_22], %25 {strides = array<i32>} : memref<1x1x16x128xf32, #tpu.memory_space<vmem>>, vector<1x1x16x128xf32>,
    return
  }
  func.func @transform_0(%arg0: i32, %arg1: i32) -> (i32, i32, i32, i32) {
    %c0_i32 = arith.constant 0 : i32
    %c0_i32_0 = arith.constant 0 : i32
    %c0_i32_1 = arith.constant 0 : i32
    return %arg0, %arg1, %c0_i32, %c0_i32_0 : i32, i32, i32, i32
  }
  func.func @transform_1(%arg0: i32, %arg1: i32) -> (i32, i32, i32) {
    %c0_i32 = arith.constant 0 : i32
    %c0_i32_0 = arith.constant 0 : i32
    %c0_i32_1 = arith.constant 0 : i32
    return %arg1, %c0_i32, %c0_i32_0 : i32, i32, i32
  }
  func.func @transform_2(%arg0: i32, %arg1: i32) -> (i32, i32) {
    %c0_i32 = arith.constant 0 : i32
    %c0_i32_0 = arith.constant 0 : i32
    %c0_i32_1 = arith.constant 0 : i32
    return %c0_i32, %c0_i32_0 : i32, i32
  }
  func.func @transform_3(%arg0: i32, %arg1: i32) -> (i32, i32) {
    %c0_i32 = arith.constant 0 : i32
    %c0_i32_0 = arith.constant 0 : i32
    %c0_i32_1 = arith.constant 0 : i32
    return %c0_i32, %c0_i32_0 : i32, i32
  }
  func.func @transform_4(%arg0: i32, %arg1: i32) -> (i32, i32) {
    %c0_i32 = arith.constant 0 : i32
    %c0_i32_0 = arith.constant 0 : i32
    %c0_i32_1 = arith.constant 0 : i32
    return %c0_i32, %c0_i32_0 : i32, i32
  }
  func.func @transform_5(%arg0: i32, %arg1: i32) -> (i32, i32) {
    %c0_i32 = arith.constant 0 : i32
    %c0_i32_0 = arith.constant 0 : i32
    %c0_i32_1 = arith.constant 0 : i32
    return %c0_i32, %c0_i32_0 : i32, i32
  }
  func.func @transform_6(%arg0: i32, %arg1: i32) -> (i32, i32, i32, i32) {
    %c0_i32 = arith.constant 0 : i32
    %c0_i32_0 = arith.constant 0 : i32
    %c0_i32_1 = arith.constant 0 : i32
    return %arg0, %arg1, %c0_i32, %c0_i32_0 : i32, i32, i32, i32
  }
}

module attributes {stable_mosaic.version = 11 : i64} {
  func.func @_filtered_lrelu_kernel(%arg0: i32, %arg1: i32, %arg2: memref<1x1x16x128xf32, #tpu.memory_space<vmem>>, %arg3: memref<1x1x128xf32, #tpu.memory_space<vmem>>, %arg4: memref<128x336xbf16, #tpu.memory_space<vmem>>, %arg5: memref<42x16xbf16, #tpu.memory_space<vmem>>, %arg6: memref<16x42xbf16, #tpu.memory_space<vmem>>, %arg7: memref<336x128xbf16, #tpu.memory_space<vmem>>, %arg8: memref<1x1x16x128xf32, #tpu.memory_space<vmem>>) attributes {dimension_semantics = [#tpu.dimension_semantics<parallel>, #tpu.dimension_semantics<parallel>], iteration_bounds = array<i64: 2, 1>, scalar_prefetch = 0 : i64, scratch_operands = 0 : i64, tpu.core_type = #tpu.core_type<tc>, window_params = [{transform_indices = @transform_0, window_bounds = array<i64: 1, 1, 16, 128>}, {transform_indices = @transform_1, window_bounds = array<i64: 1, 1, 128>}, {pipeline_mode = #tpu.pipeline_mode<synchronous>, transform_indices = @transform_2, window_bounds = array<i64: 128, 336>}, {pipeline_mode = #tpu.pipeline_mode<synchronous>, transform_indices = @transform_3, window_bounds = array<i64: 42, 16>}, {pipeline_mode = #tpu.pipeline_mode<synchronous>, transform_indices = @transform_4, window_bounds = array<i64: 16, 42>}, {pipeline_mode = #tpu.pipeline_mode<synchronous>, transform_indices = @transform_5, window_bounds = array<i64: 336, 128>}, {transform_indices = @transform_6, window_bounds = array<i64: 1, 1, 16, 128>}]} {
    %c0 = arith.constant 0 : index
    %c0_0 = arith.constant 0 : index
    %c0_1 = arith.constant 0 : index
    %c0_2 = arith.constant 0 : index
    %0 = vector.load %arg2[%c0, %c0_0, %c0_1, %c0_2] : memref<1x1x16x128xf32, #tpu.memory_space<vmem>>, vector<1x1x16x128xf32>
    %1 = vector.shape_cast %0 : vector<1x1x16x128xf32> to vector<16x128xf32>
    %c0_3 = arith.constant 0 : index
    %c0_4 = arith.constant 0 : index
    %c0_5 = arith.constant 0 : index
    %2 = vector.load %arg3[%c0_3, %c0_4, %c0_5] : memref<1x1x128xf32, #tpu.memory_space<vmem>>, vector<1x1x128xf32>
    %3 = vector.shape_cast %2 : vector<1x1x128xf32> to vector<1x128xf32>
    %4 = vector.broadcast %3 : vector<1x128xf32> to vector<16x128xf32>
    %5 = arith.addf %1, %4 : vector<16x128xf32>
    %6 = arith.truncf %5 : vector<16x128xf32> to vector<16x128xbf16>
    %c0_6 = arith.constant 0 : index
    %c0_7 = arith.constant 0 : index
    %7 = vector.load %arg4[%c0_6, %c0_7] : memref<128x336xbf16, #tpu.memory_space<vmem>>, vector<128x336xbf16>
    %cst = arith.constant dense<0.000000e+00> : vector<16x336xf32>
    %8 = tpu.matmul %6, %7, %cst {dimension_numbers = #tpu.dot_dimension_numbers<[1], [0], [0], [1], [0, 0, 1, 1], [], []>} : vector<16x128xbf16>, vector<128x336xbf16>, vector<16x336xf32> -> vector<16x336xf32>
    %c0_8 = arith.constant 0 : index
    %c0_9 = arith.constant 0 : index
    %9 = vector.load %arg5[%c0_8, %c0_9] : memref<42x16xbf16, #tpu.memory_space<vmem>>, vector<42x16xbf16>
    %10 = arith.truncf %8 : vector<16x336xf32> to vector<16x336xbf16>
    %cst_10 = arith.constant dense<0.000000e+00> : vector<42x336xf32>
    %11 = tpu.matmul %9, %10, %cst_10 {dimension_numbers = #tpu.dot_dimension_numbers<[1], [0], [0], [1], [0, 0, 1, 1], [], []>} : vector<42x16xbf16>, vector<16x336xbf16>, vector<42x336xf32> -> vector<42x336xf32>
    %cst_11 = arith.constant 0.000000e+00 : f32
    %12 = vector.broadcast %cst_11 : f32 to vector<42x336xf32>
    %13 = arith.cmpf oge, %11, %12 : vector<42x336xf32>
    %cst_12 = arith.constant 2.000000e-01 : f32
    %14 = vector.broadcast %cst_12 : f32 to vector<42x336xf32>
    %15 = arith.mulf %14, %11 : vector<42x336xf32>
    %16 = arith.select %13, %11, %15 : vector<42x336xi1>, vector<42x336xf32>
    %c0_13 = arith.constant 0 : index
    %c0_14 = arith.constant 0 : index
    %17 = vector.load %arg6[%c0_13, %c0_14] : memref<16x42xbf16, #tpu.memory_space<vmem>>, vector<16x42xbf16>
    %18 = arith.truncf %16 : vector<42x336xf32> to vector<42x336xbf16>
    %cst_15 = arith.constant dense<0.000000e+00> : vector<16x336xf32>
    %19 = tpu.matmul %17, %18, %cst_15 {dimension_numbers = #tpu.dot_dimension_numbers<[1], [0], [0], [1], [0, 0, 1, 1], [], []>} : vector<16x42xbf16>, vector<42x336xbf16>, vector<16x336xf32> -> vector<16x336xf32>
    %20 = arith.truncf %19 : vector<16x336xf32> to vector<16x336xbf16>
    %c0_16 = arith.constant 0 : index
    %c0_17 = arith.constant 0 : index
    %21 = vector.load %arg7[%c0_16, %c0_17] : memref<336x128xbf16, #tpu.memory_space<vmem>>, vector<336x128xbf16>
    %cst_18 = arith.constant dense<0.000000e+00> : vector<16x128xf32>
    %22 = tpu.matmul %20, %21, %cst_18 {dimension_numbers = #tpu.dot_dimension_numbers<[1], [0], [0], [1], [0, 0, 1, 1], [], []>} : vector<16x336xbf16>, vector<336x128xbf16>, vector<16x128xf32> -> vector<16x128xf32>
    %c0_19 = arith.constant 0 : index
    %c0_20 = arith.constant 0 : index
    %c0_21 = arith.constant 0 : index
    %c0_22 = arith.constant 0 : index
    %23 = vector.load %arg8[%c0_19, %c0_20, %c0_21, %c0_22] : memref<1x1x16x128xf32, #tpu.memory_space<vmem>>, vector<1x1x16x128xf32>
    %24 = vector.shape_cast %23 : vector<1x1x16x128xf32> to vector<16x128xf32>
    %25 = vector.shape_cast %22 : vector<16x128xf32> to vector<1x1x16x128xf32>
    tpu.vector_store %arg8[%c0_19, %c0_20, %c0_21, %c0_22], %25 {strides = array<i32>} : memref<1x1x16x128xf32, #tpu.memory_space<vmem>>, vector<1x1x16x128xf32>,
    return
  }
  func.func @transform_0(%arg0: i32, %arg1: i32) -> (i32, i32, i32, i32) {
    %c0_i32 = arith.constant 0 : i32
    %c0_i32_0 = arith.constant 0 : i32
    %c0_i32_1 = arith.constant 0 : i32
    return %arg0, %arg1, %c0_i32, %c0_i32_0 : i32, i32, i32, i32
  }
  func.func @transform_1(%arg0: i32, %arg1: i32) -> (i32, i32, i32) {
    %c0_i32 = arith.constant 0 : i32
    %c0_i32_0 = arith.constant 0 : i32
    %c0_i32_1 = arith.constant 0 : i32
    return %arg1, %c0_i32, %c0_i32_0 : i32, i32, i32
  }
  func.func @transform_2(%arg0: i32, %arg1: i32) -> (i32, i32) {
    %c0_i32 = arith.constant 0 : i32
    %c0_i32_0 = arith.constant 0 : i32
    %c0_i32_1 = arith.constant 0 : i32
    return %c0_i32, %c0_i32_0 : i32, i32
  }
  func.func @transform_3(%arg0: i32, %arg1: i32) -> (i32, i32) {
    %c0_i32 = arith.constant 0 : i32
    %c0_i32_0 = arith.constant 0 : i32
    %c0_i32_1 = arith.constant 0 : i32
    return %c0_i32, %c0_i32_0 : i32, i32
  }
  func.func @transform_4(%arg0: i32, %arg1: i32) -> (i32, i32) {
    %c0_i32 = arith.constant 0 : i32
    %c0_i32_0 = arith.constant 0 : i32
    %c0_i32_1 = arith.constant 0 : i32
    return %c0_i32, %c0_i32_0 : i32, i32
  }
  func.func @transform_5(%arg0: i32, %arg1: i32) -> (i32, i32) {
    %c0_i32 = arith.constant 0 : i32
    %c0_i32_0 = arith.constant 0 : i32
    %c0_i32_1 = arith.constant 0 : i32
    return %c0_i32, %c0_i32_0 : i32, i32
  }
  func.func @transform_6(%arg0: i32, %arg1: i32) -> (i32, i32, i32, i32) {
    %c0_i32 = arith.constant 0 : i32
    %c0_i32_0 = arith.constant 0 : i32
    %c0_i32_1 = arith.constant 0 : i32
    return %arg0, %arg1, %c0_i32, %c0_i32_0 : i32, i32, i32, i32
  }
}

</mosaic_0001>

<llo_original>
// kernel: tpu_custom_call.1
$region0: #{tpu_custom_call.1}
  #allocation0 [shape = 'u32[]', space=smem, size = 0x4, offset = 0x4, fixed_abs, tag = 'smem constant byte address 0x4 - core index']
  #allocation1 [shape = 'u32[72,128]{1,0:T(1,128)}', space=vmem, size = 0x9000, scoped, tag = 'internal scratch']
  %s0 = inlined_call_operand.vmem [shape: f32[2,1,16,128], index: 0, kind: input, shape index: {}]
  %s1 = inlined_call_operand.vmem [shape: f32[1,1,128], index: 1, kind: input, shape index: {}]
  %s2 = inlined_call_operand.vmem [shape: bf16[128,336], index: 2, kind: input, shape index: {}]
  %s3 = inlined_call_operand.vmem [shape: bf16[42,16], index: 3, kind: input, shape index: {}]
  %s4 = inlined_call_operand.vmem [shape: bf16[16,42], index: 4, kind: input, shape index: {}]
  %s5 = inlined_call_operand.vmem [shape: bf16[336,128], index: 5, kind: input, shape index: {}]
  %s6 = inlined_call_operand.hbm [shape: f32[2,1,16,128], index: 6, kind: output, shape index: {}]
  %s7 = sld [smem:[#allocation0]]
  $region57: #{tpu_custom_call.1} parent=0
    _
  %s9 = ssub.s32 1, %s7
  %s10 = scalar_select 0, %s9, %s7
  $region1: #{tpu_custom_call.1} parent=0
    #allocation2 [shape = 'u8[16384]{0}', space=vmem, size = 0x4000, scoped, tag = 'output window, operand 0']
    #allocation3 [shape = 's32[2]{0}', space=sflag, size = 0x8, scoped, tag = 'scoped memory for tpu_custom_call.1']
    %11 = vsyncpa [#allocation3], 0
    %s12 = scalar_lea.sflag [#allocation3], 1
    %13 = vsyncpa %s12, 0
    loop: start=0, step=1, limit=4
    $region2: #{tpu_custom_call.1} parent=1 // loop_pre_header
      _
    $region3: #{tpu_custom_call.1} parent=1 // loop_header
      %s15 = sphi 0, %s19
      %p16 = scmp.ge.s32.totalorder %s15, 4
      %s22 = sphi 0, %s34
      %s23 = sphi 0, %s30
      %s24 = sphi 0, %s22
      %s25 = sphi 0, %s23
      %s26 = sphi 0, %s24
      %s27 = sphi 0, %s25
      %s39 = sphi 0, %s41
      %s42 = sphi 0, %s39
      %s43 = sphi 0, %s42
      %s59 = sphi 0, %s43
      %s65 = sphi 0, %s67
      %s68 = sphi 0, %s65
      %s69 = sphi 0, %s68
      %s85 = sphi 0, %s69
      %s89 = sphi 0, %s89
      %s91 = sphi 0, %s89
      %s92 = sphi 0, %s91
      %s106 = sphi 0, %s92
      %s110 = sphi 0, %s110
      %s112 = sphi 0, %s110
      %s113 = sphi 0, %s112
      %s127 = sphi 0, %s113
      %s131 = sphi 0, %s131
      %s133 = sphi 0, %s131
      %s134 = sphi 0, %s133
      %s148 = sphi 0, %s134
      %s152 = sphi 0, %s152
      %s154 = sphi 0, %s152
      %s155 = sphi 0, %s154
      %s169 = sphi 0, %s155
      %s177 = sphi 0, %s179
      %s180 = sphi 0, %s177
      %s181 = sphi 0, %s180
      %s197 = sphi 0, %s181
    $region4: #{tpu_custom_call.1} parent=1 // loop_header_branch
      %18 = sbr.rel (%p16) target = $region8
    $region5: #{tpu_custom_call.1} parent=1 // loop_body
      %s20 = ssub.s32 %s15, 1
      %s21 = ssub.s32 %s15, 2
      %s28 = sadd.s32 1, %s23
      %p29 = scmp.ge.s32.totalorder %s28, 1
      %s30 = scalar_select %p29, 0, %s28
      %s31 = sadd.s32 1, %s22
      %s32 = scalar_select %p29, %s31, %s22
      %p33 = scmp.ge.s32.totalorder %s32, 2
      %s34 = scalar_select %p33, 0, %s32
      %s35 = ssub.s32 %s22, %s34
      %s36 = ssub.s32 %s23, %s30
      %s37 = sor.u32 %s35, %s36
      %p38 = scmp.eq.s32.totalorder %s37, 0
      %s40 = sadd.s32 %s39, 1
      %s41 = scalar_select %p38, %s39, %s40
      %p44 = pneg %p38
      %p45 = scmp.eq.s32.totalorder %s15, 1
      %p46 = por %p44, %p45
      %p47 = scmp.ne.s32.totalorder %s39, %s42
      %p48 = scmp.eq.s32.totalorder %s15, 0
      %p49 = por %p47, %p48
      %p50 = scmp.ne.s32.totalorder %s39, %s42
      %p51 = scmp.eq.s32.totalorder %s20, 1
      %p52 = por %p50, %p51
      %p53 = scmp.ne.s32.totalorder %s42, %s43
      %p54 = scmp.eq.s32.totalorder %s20, 0
      %p55 = por %p53, %p54
      %p56 = scmp.ne.s32.totalorder %s42, %s43
      %p57 = scmp.eq.s32.totalorder %s21, 1
      %p58 = por %p56, %p57
      %p60 = scmp.ne.s32.totalorder %s43, %s59
      %p61 = scmp.eq.s32.totalorder %s21, 0
      %p62 = por %p60, %p61
      %s63 = ssub.s32 %s23, %s30
      %p64 = scmp.eq.s32.totalorder %s63, 0
      %s66 = sadd.s32 %s65, 1
      %s67 = scalar_select %p64, %s65, %s66
      %p70 = pneg %p64
      %p71 = scmp.eq.s32.totalorder %s15, 1
      %p72 = por %p70, %p71
      %p73 = scmp.ne.s32.totalorder %s65, %s68
      %p74 = scmp.eq.s32.totalorder %s15, 0
      %p75 = por %p73, %p74
      %p76 = scmp.ne.s32.totalorder %s65, %s68
      %p77 = scmp.eq.s32.totalorder %s20, 1
      %p78 = por %p76, %p77
      %p79 = scmp.ne.s32.totalorder %s68, %s69
      %p80 = scmp.eq.s32.totalorder %s20, 0
      %p81 = por %p79, %p80
      %p82 = scmp.ne.s32.totalorder %s68, %s69
      %p83 = scmp.eq.s32.totalorder %s21, 1
      %p84 = por %p82, %p83
      %p86 = scmp.ne.s32.totalorder %s69, %s85
      %p87 = scmp.eq.s32.totalorder %s21, 0
      %p88 = por %p86, %p87
      %s90 = sadd.s32 %s89, 1
      %p93 = scmp.eq.s32.totalorder %s15, 1
      %p94 = scmp.ne.s32.totalorder %s89, %s91
      %p95 = scmp.eq.s32.totalorder %s15, 0
      %p96 = por %p94, %p95
      %p97 = scmp.ne.s32.totalorder %s89, %s91
      %p98 = scmp.eq.s32.totalorder %s20, 1
      %p99 = por %p97, %p98
      %p100 = scmp.ne.s32.totalorder %s91, %s92
      %p101 = scmp.eq.s32.totalorder %s20, 0
      %p102 = por %p100, %p101
      %p103 = scmp.ne.s32.totalorder %s91, %s92
      %p104 = scmp.eq.s32.totalorder %s21, 1
      %p105 = por %p103, %p104
      %p107 = scmp.ne.s32.totalorder %s92, %s106
      %p108 = scmp.eq.s32.totalorder %s21, 0
      %p109 = por %p107, %p108
      %s111 = sadd.s32 %s110, 1
      %p114 = scmp.eq.s32.totalorder %s15, 1
      %p115 = scmp.ne.s32.totalorder %s110, %s112
      %p116 = scmp.eq.s32.totalorder %s15, 0
      %p117 = por %p115, %p116
      %p118 = scmp.ne.s32.totalorder %s110, %s112
      %p119 = scmp.eq.s32.totalorder %s20, 1
      %p120 = por %p118, %p119
      %p121 = scmp.ne.s32.totalorder %s112, %s113
      %p122 = scmp.eq.s32.totalorder %s20, 0
      %p123 = por %p121, %p122
      %p124 = scmp.ne.s32.totalorder %s112, %s113
      %p125 = scmp.eq.s32.totalorder %s21, 1
      %p126 = por %p124, %p125
      %p128 = scmp.ne.s32.totalorder %s113, %s127
      %p129 = scmp.eq.s32.totalorder %s21, 0
      %p130 = por %p128, %p129
      %s132 = sadd.s32 %s131, 1
      %p135 = scmp.eq.s32.totalorder %s15, 1
      %p136 = scmp.ne.s32.totalorder %s131, %s133
      %p137 = scmp.eq.s32.totalorder %s15, 0
      %p138 = por %p136, %p137
      %p139 = scmp.ne.s32.totalorder %s131, %s133
      %p140 = scmp.eq.s32.totalorder %s20, 1
      %p141 = por %p139, %p140
      %p142 = scmp.ne.s32.totalorder %s133, %s134
      %p143 = scmp.eq.s32.totalorder %s20, 0
      %p144 = por %p142, %p143
      %p145 = scmp.ne.s32.totalorder %s133, %s134
      %p146 = scmp.eq.s32.totalorder %s21, 1
      %p147 = por %p145, %p146
      %p149 = scmp.ne.s32.totalorder %s134, %s148
      %p150 = scmp.eq.s32.totalorder %s21, 0
      %p151 = por %p149, %p150
      %s153 = sadd.s32 %s152, 1
      %p156 = scmp.eq.s32.totalorder %s15, 1
      %p157 = scmp.ne.s32.totalorder %s152, %s154
      %p158 = scmp.eq.s32.totalorder %s15, 0
      %p159 = por %p157, %p158
      %p160 = scmp.ne.s32.totalorder %s152, %s154
      %p161 = scmp.eq.s32.totalorder %s20, 1
      %p162 = por %p160, %p161
      %p163 = scmp.ne.s32.totalorder %s154, %s155
      %p164 = scmp.eq.s32.totalorder %s20, 0
      %p165 = por %p163, %p164
      %p166 = scmp.ne.s32.totalorder %s154, %s155
      %p167 = scmp.eq.s32.totalorder %s21, 1
      %p168 = por %p166, %p167
      %p170 = scmp.ne.s32.totalorder %s155, %s169
      %p171 = scmp.eq.s32.totalorder %s21, 0
      %p172 = por %p170, %p171
      %s173 = ssub.s32 %s22, %s34
      %s174 = ssub.s32 %s23, %s30
      %s175 = sor.u32 %s173, %s174
      %p176 = scmp.eq.s32.totalorder %s175, 0
      %s178 = sadd.s32 %s177, 1
      %s179 = scalar_select %p176, %s177, %s178
      %p182 = pneg %p176
      %p183 = scmp.eq.s32.totalorder %s15, 1
      %p184 = por %p182, %p183
      %p185 = scmp.ne.s32.totalorder %s177, %s180
      %p186 = scmp.eq.s32.totalorder %s15, 0
      %p187 = por %p185, %p186
      %p188 = scmp.ne.s32.totalorder %s177, %s180
      %p189 = scmp.eq.s32.totalorder %s20, 1
      %p190 = por %p188, %p189
      %p191 = scmp.ne.s32.totalorder %s180, %s181
      %p192 = scmp.eq.s32.totalorder %s20, 0
      %p193 = por %p191, %p192
      %p194 = scmp.ne.s32.totalorder %s180, %s181
      %p195 = scmp.eq.s32.totalorder %s21, 1
      %p196 = por %p194, %p195
      %p198 = scmp.ne.s32.totalorder %s181, %s197
      %p199 = scmp.eq.s32.totalorder %s21, 0
      %p200 = por %p198, %p199
      %p201 = scmp.le.s32.totalorder 1, %s15
      %p202 = scmp.lt.s32.totalorder %s15, 3
      %p203 = pnand %p201, %p202
      %p204 = pneg %p203
      // Predicated region
      $region9: #{tpu_custom_call.1} parent=5 // pred_check
        _
      $region10: #{tpu_custom_call.1} parent=5 // pred_check_branch
        %206 = sbr.rel (%p203) target = $region12
      $region11: #{tpu_custom_call.1} parent=5 // pred_region
        %s207 = ssub.s32 %s15, 1
        // Predicated region
        $region13: #{tpu_custom_call.1} parent=11 // pred_check
          %p208 = pneg %p81
        $region14: #{tpu_custom_call.1} parent=11 // pred_check_branch
          %210 = sbr.rel (%p208) target = $region16
        $region15: #{tpu_custom_call.1} parent=11 // pred_region
          %p211 = scmp.lt.s32.totalorder %s25, 0
          %s212 = scalar_select %p211, %s25, 0
          %s213 = scalar_lea.vmem %s1, %s212
        $region16: #{tpu_custom_call.1} parent=11 // pred_fallthru
          _
        // Predicated region
        $region17: #{tpu_custom_call.1} parent=11 // pred_check
          %p214 = pneg %p102
        $region18: #{tpu_custom_call.1} parent=11 // pred_check_branch
          %216 = sbr.rel (%p214) target = $region20
        $region19: #{tpu_custom_call.1} parent=11 // pred_region
          _
        $region20: #{tpu_custom_call.1} parent=11 // pred_fallthru
          _
        // Predicated region
        $region21: #{tpu_custom_call.1} parent=11 // pred_check
          %p217 = pneg %p123
        $region22: #{tpu_custom_call.1} parent=11 // pred_check_branch
          %219 = sbr.rel (%p217) target = $region24
        $region23: #{tpu_custom_call.1} parent=11 // pred_region
          _
        $region24: #{tpu_custom_call.1} parent=11 // pred_fallthru
          _
        // Predicated region
        $region25: #{tpu_custom_call.1} parent=11 // pred_check
          %p220 = pneg %p144
        $region26: #{tpu_custom_call.1} parent=11 // pred_check_branch
          %222 = sbr.rel (%p220) target = $region28
        $region27: #{tpu_custom_call.1} parent=11 // pred_region
          _
        $region28: #{tpu_custom_call.1} parent=11 // pred_fallthru
          _
        // Predicated region
        $region29: #{tpu_custom_call.1} parent=11 // pred_check
          %p223 = pneg %p165
        $region30: #{tpu_custom_call.1} parent=11 // pred_check_branch
          %225 = sbr.rel (%p223) target = $region32
        $region31: #{tpu_custom_call.1} parent=11 // pred_region
          _
        $region32: #{tpu_custom_call.1} parent=11 // pred_fallthru
          _
      $region12: #{tpu_custom_call.1} parent=5 // pred_fallthru
        _
      %p226 = scmp.lt.s32.totalorder %s15, 2
      // Predicated region
      $region33: #{tpu_custom_call.1} parent=5 // pred_check
        %p227 = pneg %p226
      $region34: #{tpu_custom_call.1} parent=5 // pred_check_branch
        %229 = sbr.rel (%p227) target = $region36
      $region35: #{tpu_custom_call.1} parent=5 // pred_region
        // Predicated region
        $region37: #{tpu_custom_call.1} parent=35 // pred_check
          %p230 = pneg %p49
        $region38: #{tpu_custom_call.1} parent=35 // pred_check_branch
          %232 = sbr.rel (%p230) target = $region40
        $region39: #{tpu_custom_call.1} parent=35 // pred_region
          %p233 = scmp.lt.s32.totalorder %s22, 1
          %s234 = scalar_select %p233, %s22, 1
          %p235 = scmp.lt.s32.totalorder %s23, 0
          %s236 = scalar_select %p235, %s23, 0
          %s237 = smul.addr %s236, 2
          %s238 = smul.addr %s234, 2
          %s239 = sadd.s32 %s237, %s238
          %s240 = smul.addr %s239, 8
          %s241 = scalar_lea.vmem %s0, %s240
        $region40: #{tpu_custom_call.1} parent=35 // pred_fallthru
          _
      $region36: #{tpu_custom_call.1} parent=5 // pred_fallthru
        _
      %p242 = scmp.le.s32.totalorder 1, %s15
      %p243 = scmp.lt.s32.totalorder %s15, 3
      %p244 = pnand %p242, %p243
      %p245 = pneg %p244
      // Predicated region
      $region41: #{tpu_custom_call.1} parent=5 // pred_check
        _
      $region42: #{tpu_custom_call.1} parent=5 // pred_check_branch
        %247 = sbr.rel (%p244) target = $region44
      $region43: #{tpu_custom_call.1} parent=5 // pred_region
        %s248 = ssub.s32 %s15, 1
        %p249 = scmp.lt.s32.totalorder %s24, 1
        %s250 = scalar_select %p249, %s24, 1
        %p251 = scmp.lt.s32.totalorder %s25, 0
        %s252 = scalar_select %p251, %s25, 0
        %s253 = smul.addr %s252, 2
        %s254 = smul.addr %s250, 2
        %s255 = sadd.s32 %s253, %s254
        %s256 = smul.addr %s255, 8
        %s257 = scalar_lea.vmem %s0, %s256
        %p258 = pneg %p55
        %p259 = pneg %p52
        %p260 = scmp.lt.s32.totalorder %s25, 0
        %s261 = scalar_select %p260, %s25, 0
        %s262 = scalar_lea.vmem %s1, %s261
        %p263 = pneg %p81
        %p264 = pneg %p78
        %p265 = pneg %p102
        %p266 = pneg %p99
        %p267 = pneg %p123
        %p268 = pneg %p120
        %p269 = pneg %p144
        %p270 = pneg %p141
        %p271 = pneg %p165
        %p272 = pneg %p162
        %p273 = pneg %p193
        %p274 = pneg %p190
        %s275 = sand.u32 %s180, 1
        %s276 = scalar_lea.sflag [#allocation3], %s275
        %s277 = sand.u32 %s180, 1
        %s278 = smul.addr %s277, 16
        %s279 = scalar_lea.vmem [#allocation2], %s278
        %p280 = scmp.lt.s32.totalorder %s24, 1
        %s281 = scalar_select %p280, %s24, 1
        %p282 = scmp.lt.s32.totalorder %s25, 0
        %s283 = scalar_select %p282, %s25, 0
        %s284 = smul.addr %s283, 2
        %s285 = smul.addr %s281, 2
        %s286 = sadd.s32 %s284, %s285
        %s287 = smul.addr %s286, 8
        %s288 = scalar_lea.vmem %s0, %s287
        %p289 = scmp.lt.s32.totalorder %s25, 0
        %s290 = scalar_select %p289, %s25, 0
        %s291 = scalar_lea.vmem %s1, %s290
        %v293 = vld [vmem:[%s288] sm:$0xff]
        %v294 = vld [vmem:[%s288 + $0x8] sm:$0xff]
        %v295 = vld [vmem:[%s291] sm:$0x1]
        %v297 = vperm.slane %v295, 0
        %v299 = vadd.f32 %v293, %v297
        %v300 = vadd.f32 %v294, %v297
        %v301 = vpack.c.bf16 %v300, %v299
        %v302 = vld [vmem:[%s2] sm:$0xff]
        %v303 = vld [vmem:[%s2 + $0x8] sm:$0xf]
        %v304 = vld [vmem:[%s2 + $0xc] sm:$0xff]
        %v305 = vld [vmem:[%s2 + $0x14] sm:$0xf]
        %v306 = vld [vmem:[%s2 + $0x18] sm:$0xff]
        %v307 = vld [vmem:[%s2 + $0x20] sm:$0xf]
        %v308 = vld [vmem:[%s2 + $0x24] sm:$0xff]
        %v309 = vld [vmem:[%s2 + $0x2c] sm:$0xf]
        %v310 = vld [vmem:[%s2 + $0x30] sm:$0xff]
        %v311 = vld [vmem:[%s2 + $0x38] sm:$0xf]
        %v312 = vld [vmem:[%s2 + $0x3c] sm:$0xff]
        %v313 = vld [vmem:[%s2 + $0x44] sm:$0xf]
        %v314 = vld [vmem:[%s2 + $0x48] sm:$0xff]
        %v315 = vld [vmem:[%s2 + $0x50] sm:$0xf]
        %v316 = vld [vmem:[%s2 + $0x54] sm:$0xff]
        %v317 = vld [vmem:[%s2 + $0x5c] sm:$0xf]
        %v318 = vld [vmem:[%s2 + $0x60] sm:$0xff]
        %v319 = vld [vmem:[%s2 + $0x68] sm:$0xf]
        %v320 = vld [vmem:[%s2 + $0x6c] sm:$0xff]
        %v321 = vld [vmem:[%s2 + $0x74] sm:$0xf]
        %v322 = vld [vmem:[%s2 + $0x78] sm:$0xff]
        %v323 = vld [vmem:[%s2 + $0x80] sm:$0xf]
        %v324 = vld [vmem:[%s2 + $0x84] sm:$0xff]
        %v325 = vld [vmem:[%s2 + $0x8c] sm:$0xf]
        %v326 = vld [vmem:[%s2 + $0x90] sm:$0xff]
        %v327 = vld [vmem:[%s2 + $0x98] sm:$0xf]
        %v328 = vld [vmem:[%s2 + $0x9c] sm:$0xff]
        %v329 = vld [vmem:[%s2 + $0xa4] sm:$0xf]
        %v330 = vld [vmem:[%s2 + $0xa8] sm:$0xff]
        %v331 = vld [vmem:[%s2 + $0xb0] sm:$0xf]
        %v332 = vld [vmem:[%s2 + $0xb4] sm:$0xff]
        %v333 = vld [vmem:[%s2 + $0xbc] sm:$0xf]
        %v366 = vunpack.c.l.b16 %v302
        %v367 = vunpack.c.h.b16 %v302
        %v368 = vunpack.c.l.b16 %v303
        %v369 = vunpack.c.l.b16 %v304
        %v370 = vunpack.c.h.b16 %v304
        %v371 = vunpack.c.l.b16 %v305
        %v372 = vunpack.c.l.b16 %v306
        %v373 = vunpack.c.h.b16 %v306
        %v374 = vunpack.c.l.b16 %v307
        %v375 = vunpack.c.l.b16 %v308
        %v376 = vunpack.c.h.b16 %v308
        %v377 = vunpack.c.l.b16 %v309
        %v378 = vunpack.c.l.b16 %v310
        %v379 = vunpack.c.h.b16 %v310
        %v380 = vunpack.c.l.b16 %v311
        %v381 = vunpack.c.l.b16 %v312
        %v382 = vunpack.c.h.b16 %v312
        %v383 = vunpack.c.l.b16 %v313
        %v384 = vunpack.c.l.b16 %v314
        %v385 = vunpack.c.h.b16 %v314
        %v386 = vunpack.c.l.b16 %v315
        %v387 = vunpack.c.l.b16 %v316
        %v388 = vunpack.c.h.b16 %v316
        %v389 = vunpack.c.l.b16 %v317
        %v390 = vunpack.c.l.b16 %v318
        %v391 = vunpack.c.h.b16 %v318
        %v392 = vunpack.c.l.b16 %v319
        %v393 = vunpack.c.l.b16 %v320
        %v394 = vunpack.c.h.b16 %v320
        %v395 = vunpack.c.l.b16 %v321
        %v396 = vunpack.c.l.b16 %v322
        %v397 = vunpack.c.h.b16 %v322
        %v398 = vunpack.c.l.b16 %v323
        %v399 = vunpack.c.l.b16 %v324
        %v400 = vunpack.c.h.b16 %v324
        %v401 = vunpack.c.l.b16 %v325
        %v402 = vunpack.c.l.b16 %v326
        %v403 = vunpack.c.h.b16 %v326
        %v404 = vunpack.c.l.b16 %v327
        %v405 = vunpack.c.l.b16 %v328
        %v406 = vunpack.c.h.b16 %v328
        %v407 = vunpack.c.l.b16 %v329
        %v408 = vunpack.c.l.b16 %v330
        %v409 = vunpack.c.h.b16 %v330
        %v410 = vunpack.c.l.b16 %v331
        %v411 = vunpack.c.l.b16 %v332
        %v412 = vunpack.c.h.b16 %v332
        %v413 = vunpack.c.l.b16 %v333
        %v414 = vpack.c.b16 %v369, %v366
        %v415 = vpack.c.b16 %v370, %v367
        %v416 = vpack.c.b16 %v371, %v368
        %v417 = vpack.c.b16 %v375, %v372
        %v418 = vpack.c.b16 %v376, %v373
        %v419 = vpack.c.b16 %v377, %v374
        %v420 = vpack.c.b16 %v381, %v378
        %v421 = vpack.c.b16 %v382, %v379
        %v422 = vpack.c.b16 %v383, %v380
        %v423 = vpack.c.b16 %v387, %v384
        %v424 = vpack.c.b16 %v388, %v385
        %v425 = vpack.c.b16 %v389, %v386
        %v426 = vpack.c.b16 %v393, %v390
        %v427 = vpack.c.b16 %v394, %v391
        %v428 = vpack.c.b16 %v395, %v392
        %v429 = vpack.c.b16 %v399, %v396
        %v430 = vpack.c.b16 %v400, %v397
        %v431 = vpack.c.b16 %v401, %v398
        %v432 = vpack.c.b16 %v405, %v402
        %v433 = vpack.c.b16 %v406, %v403
        %v434 = vpack.c.b16 %v407, %v404
        %v435 = vpack.c.b16 %v411, %v408
        %v436 = vpack.c.b16 %v412, %v409
        %v437 = vpack.c.b16 %v413, %v410
        %462 = vmatpush.bf16.msra.mxu0 %v435
        %463 = vmatpush.bf16.msra.mxu0 %v432
        %464 = vmatpush.bf16.msra.mxu0 %v429
        %465 = vmatpush.bf16.msra.mxu0 %v426
        %466 = vmatpush.bf16.msra.mxu0 %v423
        %467 = vmatpush.bf16.msra.mxu0 %v420
        %468 = vmatpush.bf16.msra.mxu0 %v417
        %469 = vmatpush.bf16.msra.mxu0 %v414
        %470 = vmatmul.bf16.gmra.mxu0 %v301
        %v471 = vpop.f32.mrf.mxu0
        %v472 = vadd.f32 0.0, %v471
        %v473 = vpop.f32.mrf.mxu0
        %v474 = vadd.f32 0.0, %v473
        %475 = vdwg.mxu0
        %476 = vmatpush.bf16.msra.mxu0 %v436
        %477 = vmatpush.bf16.msra.mxu0 %v433
        %478 = vmatpush.bf16.msra.mxu0 %v430
        %479 = vmatpush.bf16.msra.mxu0 %v427
        %480 = vmatpush.bf16.msra.mxu0 %v424
        %481 = vmatpush.bf16.msra.mxu0 %v421
        %482 = vmatpush.bf16.msra.mxu0 %v418
        %483 = vmatpush.bf16.msra.mxu0 %v415
        %484 = vmatmul.bf16.gmra.mxu0 %v301
        %v485 = vpop.f32.mrf.mxu0
        %v486 = vadd.f32 0.0, %v485
        %v487 = vpop.f32.mrf.mxu0
        %v488 = vadd.f32 0.0, %v487
        %489 = vdwg.mxu0
        %490 = vmatpush.bf16.msra.mxu0 %v437
        %491 = vmatpush.bf16.msra.mxu0 %v434
        %492 = vmatpush.bf16.msra.mxu0 %v431
        %493 = vmatpush.bf16.msra.mxu0 %v428
        %494 = vmatpush.bf16.msra.mxu0 %v425
        %495 = vmatpush.bf16.msra.mxu0 %v422
        %496 = vmatpush.bf16.msra.mxu0 %v419
        %497 = vmatpush.bf16.msra.mxu0 %v416
        %498 = vmatmul.bf16.gmra.mxu0 %v301
        %v499 = vpop.f32.mrf.mxu0
        %v500 = vadd.f32 0.0, %v499
        %v501 = vpop.f32.mrf.mxu0
        %v502 = vadd.f32 0.0, %v501
        %503 = vdwg.mxu0
        %v504 = vld [vmem:[%s3] sm:$0xf]
        %v505 = vld [vmem:[%s3 + $0x4] sm:$0xf]
        %v506 = vld [vmem:[%s3 + $0x8] sm:$0xf]
        %v507 = vld [vmem:[%s3 + $0xc] sm:$0xf]
        %v508 = vld [vmem:[%s3 + $0x10] sm:$0xf]
        %v509 = vld [vmem:[%s3 + $0x14] sm:$0x1]
        %v510 = vpack.c.bf16 %v474, %v472
        %v511 = vpack.c.bf16 %v488, %v486
        %v512 = vpack.c.bf16 %v502, %v500
        %v519 = vunpack.c.l.b16 %v504
        %v520 = vunpack.c.l.b16 %v505
        %v521 = vunpack.c.l.b16 %v506
        %v522 = vunpack.c.l.b16 %v507
        %v523 = vunpack.c.l.b16 %v508
        %v524 = vunpack.c.l.b16 %v509
        %v525 = vpack.c.b16 %v520, %v519
        %v526 = vpack.c.b16 %v522, %v521
        %v527 = vpack.c.b16 %v524, %v523
        %vm528 = vcmask 130048
        %v530 = vsel %vm528, %v525, 0
        %v533 = vsel %vm528, %v526, 0
        %v536 = vsel %vm528, %v527, 0
        %538 = vmatpush.bf16.msra.mxu0 0
        %539 = vmatpush.bf16.msra.mxu0 0
        %540 = vmatpush.bf16.msra.mxu0 0
        %541 = vmatpush.bf16.msra.mxu0 0
        %542 = vmatpush.bf16.msra.mxu0 0
        %543 = vmatpush.bf16.msra.mxu0 0
        %544 = vmatpush.bf16.msra.mxu0 0
        %545 = vmatpush.bf16.msra.mxu0 %v510
        %546 = vmatmul.bf16.gmra.mxu0 %v530
        %v547 = vpop.f32.mrf.mxu0
        %v548 = vadd.f32 0.0, %v547
        %v549 = vpop.f32.mrf.mxu0
        %v550 = vadd.f32 0.0, %v549
        %551 = vmatmul.bf16.gmra.mxu0 %v533
        %v552 = vpop.f32.mrf.mxu0
        %v553 = vadd.f32 0.0, %v552
        %v554 = vpop.f32.mrf.mxu0
        %v555 = vadd.f32 0.0, %v554
        %556 = vmatmul.bf16.gmra.mxu0 %v536
        %v557 = vpop.f32.mrf.mxu0
        %v558 = vadd.f32 0.0, %v557
        %v559 = vpop.f32.mrf.mxu0
        %v560 = vadd.f32 0.0, %v559
        %561 = vdwg.mxu0
        %562 = vmatpush.bf16.msra.mxu0 0
        %563 = vmatpush.bf16.msra.mxu0 0
        %564 = vmatpush.bf16.msra.mxu0 0
        %565 = vmatpush.bf16.msra.mxu0 0
        %566 = vmatpush.bf16.msra.mxu0 0
        %567 = vmatpush.bf16.msra.mxu0 0
        %568 = vmatpush.bf16.msra.mxu0 0
        %569 = vmatpush.bf16.msra.mxu0 %v511
        %570 = vmatmul.bf16.gmra.mxu0 %v530
        %v571 = vpop.f32.mrf.mxu0
        %v572 = vadd.f32 0.0, %v571
        %v573 = vpop.f32.mrf.mxu0
        %v574 = vadd.f32 0.0, %v573
        %575 = vmatmul.bf16.gmra.mxu0 %v533
        %v576 = vpop.f32.mrf.mxu0
        %v577 = vadd.f32 0.0, %v576
        %v578 = vpop.f32.mrf.mxu0
        %v579 = vadd.f32 0.0, %v578
        %580 = vmatmul.bf16.gmra.mxu0 %v536
        %v581 = vpop.f32.mrf.mxu0
        %v582 = vadd.f32 0.0, %v581
        %v583 = vpop.f32.mrf.mxu0
        %v584 = vadd.f32 0.0, %v583
        %585 = vdwg.mxu0
        %586 = vmatpush.bf16.msra.mxu0 0
        %587 = vmatpush.bf16.msra.mxu0 0
        %588 = vmatpush.bf16.msra.mxu0 0
        %589 = vmatpush.bf16.msra.mxu0 0
        %590 = vmatpush.bf16.msra.mxu0 0
        %591 = vmatpush.bf16.msra.mxu0 0
        %592 = vmatpush.bf16.msra.mxu0 0
        %593 = vmatpush.bf16.msra.mxu0 %v512
        %594 = vmatmul.bf16.gmra.mxu0 %v530
        %v595 = vpop.f32.mrf.mxu0
        %v596 = vadd.f32 0.0, %v595
        %v597 = vpop.f32.mrf.mxu0
        %v598 = vadd.f32 0.0, %v597
        %599 = vmatmul.bf16.gmra.mxu0 %v533
        %v600 = vpop.f32.mrf.mxu0
        %v601 = vadd.f32 0.0, %v600
        %v602 = vpop.f32.mrf.mxu0
        %v603 = vadd.f32 0.0, %v602
        %604 = vmatmul.bf16.gmra.mxu0 %v536
        %v605 = vpop.f32.mrf.mxu0
        %v606 = vadd.f32 0.0, %v605
        %v607 = vpop.f32.mrf.mxu0
        %v608 = vadd.f32 0.0, %v607
        %609 = vdwg.mxu0
        %vm610 = vcmp.ge.f32.partialorder %v548, 0.0
        %vm611 = vcmp.ge.f32.partialorder %v572, 0.0
        %vm612 = vcmp.ge.f32.partialorder %v596, 0.0
        %vm613 = vcmp.ge.f32.partialorder %v550, 0.0
        %vm614 = vcmp.ge.f32.partialorder %v574, 0.0
        %vm615 = vcmp.ge.f32.partialorder %v598, 0.0
        %vm616 = vcmp.ge.f32.partialorder %v553, 0.0
        %vm617 = vcmp.ge.f32.partialorder %v577, 0.0
        %vm618 = vcmp.ge.f32.partialorder %v601, 0.0
        %vm619 = vcmp.ge.f32.partialorder %v555, 0.0
        %vm620 = vcmp.ge.f32.partialorder %v579, 0.0
        %vm621 = vcmp.ge.f32.partialorder %v603, 0.0
        %vm622 = vcmp.ge.f32.partialorder %v558, 0.0
        %vm623 = vcmp.ge.f32.partialorder %v582, 0.0
        %vm624 = vcmp.ge.f32.partialorder %v606, 0.0
        %vm625 = vcmp.ge.f32.partialorder %v560, 0.0
        %vm626 = vcmp.ge.f32.partialorder %v584, 0.0
        %vm627 = vcmp.ge.f32.partialorder %v608, 0.0
        %v628 = vmul.f32 %v548, 0.2
        %v629 = vmul.f32 %v572, 0.2
        %v630 = vmul.f32 %v596, 0.2
        %v631 = vmul.f32 %v550, 0.2
        %v632 = vmul.f32 %v574, 0.2
        %v633 = vmul.f32 %v598, 0.2
        %v634 = vmul.f32 %v553, 0.2
        %v635 = vmul.f32 %v577, 0.2
        %v636 = vmul.f32 %v601, 0.2
        %v637 = vmul.f32 %v555, 0.2
        %v638 = vmul.f32 %v579, 0.2
        %v639 = vmul.f32 %v603, 0.2
        %v640 = vmul.f32 %v558, 0.2
        %v641 = vmul.f32 %v582, 0.2
        %v642 = vmul.f32 %v606, 0.2
        %v643 = vmul.f32 %v560, 0.2
        %v644 = vmul.f32 %v584, 0.2
        %v645 = vmul.f32 %v608, 0.2
        %v646 = vsel %vm610, %v548, %v628
        %v647 = vsel %vm611, %v572, %v629
        %v648 = vsel %vm612, %v596, %v630
        %v649 = vsel %vm613, %v550, %v631
        %v650 = vsel %vm614, %v574, %v632
        %v651 = vsel %vm615, %v598, %v633
        %v652 = vsel %vm616, %v553, %v634
        %v653 = vsel %vm617, %v577, %v635
        %v654 = vsel %vm618, %v601, %v636
        %v655 = vsel %vm619, %v555, %v637
        %v656 = vsel %vm620, %v579, %v638
        %v657 = vsel %vm621, %v603, %v639
        %v658 = vsel %vm622, %v558, %v640
        %v659 = vsel %vm623, %v582, %v641
        %v660 = vsel %vm624, %v606, %v642
        %v661 = vsel %vm625, %v560, %v643
        %v662 = vsel %vm626, %v584, %v644
        %v663 = vsel %vm627, %v608, %v645
        %v664 = vld [vmem:[%s4] sm:$0xf]
        %v665 = vld [vmem:[%s4 + $0x4] sm:$0xf]
        %v666 = vpack.c.bf16 %v649, %v646
        %v667 = vpack.c.bf16 %v650, %v647
        %v668 = vpack.c.bf16 %v651, %v648
        %v669 = vpack.c.bf16 %v655, %v652
        %v670 = vpack.c.bf16 %v656, %v653
        %v671 = vpack.c.bf16 %v657, %v654
        %v672 = vpack.c.bf16 %v661, %v658
        %v673 = vpack.c.bf16 %v662, %v659
        %v674 = vpack.c.bf16 %v663, %v660
        %v677 = vunpack.c.l.b16 %v664
        %v678 = vunpack.c.l.b16 %v665
        %v679 = vpack.c.b16 %v678, %v677
        %vm680 = vcmask 343040
        %v682 = vsel %vm680, %v679, 0
        %vm684 = vcmask 1044480
        %v686 = vsel %vm684, %v672, 0
        %v689 = vsel %vm684, %v673, 0
        %v692 = vsel %vm684, %v674, 0
        %694 = vmatpush.bf16.msra.mxu0 0
        %695 = vmatpush.bf16.msra.mxu0 0
        %696 = vmatpush.bf16.msra.mxu0 0
        %697 = vmatpush.bf16.msra.mxu0 0
        %698 = vmatpush.bf16.msra.mxu0 0
        %699 = vmatpush.bf16.msra.mxu0 %v686
        %700 = vmatpush.bf16.msra.mxu0 %v669
        %701 = vmatpush.bf16.msra.mxu0 %v666
        %702 = vmatmul.bf16.gmra.mxu0 %v682
        %v703 = vpop.f32.mrf.mxu0
        %v704 = vadd.f32 0.0, %v703
        %v705 = vpop.f32.mrf.mxu0
        %v706 = vadd.f32 0.0, %v705
        %707 = vdwg.mxu0
        %708 = vmatpush.bf16.msra.mxu0 0
        %709 = vmatpush.bf16.msra.mxu0 0
        %710 = vmatpush.bf16.msra.mxu0 0
        %711 = vmatpush.bf16.msra.mxu0 0
        %712 = vmatpush.bf16.msra.mxu0 0
        %713 = vmatpush.bf16.msra.mxu0 %v689
        %714 = vmatpush.bf16.msra.mxu0 %v670
        %715 = vmatpush.bf16.msra.mxu0 %v667
        %716 = vmatmul.bf16.gmra.mxu0 %v682
        %v717 = vpop.f32.mrf.mxu0
        %v718 = vadd.f32 0.0, %v717
        %v719 = vpop.f32.mrf.mxu0
        %v720 = vadd.f32 0.0, %v719
        %721 = vdwg.mxu0
        %722 = vmatpush.bf16.msra.mxu0 0
        %723 = vmatpush.bf16.msra.mxu0 0
        %724 = vmatpush.bf16.msra.mxu0 0
        %725 = vmatpush.bf16.msra.mxu0 0
        %726 = vmatpush.bf16.msra.mxu0 0
        %727 = vmatpush.bf16.msra.mxu0 %v692
        %728 = vmatpush.bf16.msra.mxu0 %v671
        %729 = vmatpush.bf16.msra.mxu0 %v668
        %730 = vmatmul.bf16.gmra.mxu0 %v682
        %v731 = vpop.f32.mrf.mxu0
        %v732 = vadd.f32 0.0, %v731
        %v733 = vpop.f32.mrf.mxu0
        %v734 = vadd.f32 0.0, %v733
        %735 = vdwg.mxu0
        %v736 = vpack.c.bf16 %v706, %v704
        %v737 = vpack.c.bf16 %v720, %v718
        %v738 = vpack.c.bf16 %v734, %v732
        %v739 = vld [vmem:[%s5] sm:$0xf]
        %v740 = vld [vmem:[%s5 + $0x4] sm:$0xf]
        %v741 = vld [vmem:[%s5 + $0x8] sm:$0xf]
        %v742 = vld [vmem:[%s5 + $0xc] sm:$0xf]
        %v743 = vld [vmem:[%s5 + $0x10] sm:$0xf]
        %v744 = vld [vmem:[%s5 + $0x14] sm:$0xf]
        %v745 = vld [vmem:[%s5 + $0x18] sm:$0xf]
        %v746 = vld [vmem:[%s5 + $0x1c] sm:$0xf]
        %v747 = vld [vmem:[%s5 + $0x20] sm:$0xf]
        %v748 = vld [vmem:[%s5 + $0x24] sm:$0xf]
        %v749 = vld [vmem:[%s5 + $0x28] sm:$0xf]
        %v750 = vld [vmem:[%s5 + $0x2c] sm:$0xf]
        %v751 = vld [vmem:[%s5 + $0x30] sm:$0xf]
        %v752 = vld [vmem:[%s5 + $0x34] sm:$0xf]
        %v753 = vld [vmem:[%s5 + $0x38] sm:$0xf]
        %v754 = vld [vmem:[%s5 + $0x3c] sm:$0xf]
        %v755 = vld [vmem:[%s5 + $0x40] sm:$0xf]
        %v756 = vld [vmem:[%s5 + $0x44] sm:$0xf]
        %v757 = vld [vmem:[%s5 + $0x48] sm:$0xf]
        %v758 = vld [vmem:[%s5 + $0x4c] sm:$0xf]
        %v759 = vld [vmem:[%s5 + $0x50] sm:$0xf]
        %v760 = vld [vmem:[%s5 + $0x54] sm:$0xf]
        %v761 = vld [vmem:[%s5 + $0x58] sm:$0xf]
        %v762 = vld [vmem:[%s5 + $0x5c] sm:$0xf]
        %v763 = vld [vmem:[%s5 + $0x60] sm:$0xf]
        %v764 = vld [vmem:[%s5 + $0x64] sm:$0xf]
        %v765 = vld [vmem:[%s5 + $0x68] sm:$0xf]
        %v766 = vld [vmem:[%s5 + $0x6c] sm:$0xf]
        %v767 = vld [vmem:[%s5 + $0x70] sm:$0xf]
        %v768 = vld [vmem:[%s5 + $0x74] sm:$0xf]
        %v769 = vld [vmem:[%s5 + $0x78] sm:$0xf]
        %v770 = vld [vmem:[%s5 + $0x7c] sm:$0xf]
        %v771 = vld [vmem:[%s5 + $0x80] sm:$0xf]
        %v772 = vld [vmem:[%s5 + $0x84] sm:$0xf]
        %v773 = vld [vmem:[%s5 + $0x88] sm:$0xf]
        %v774 = vld [vmem:[%s5 + $0x8c] sm:$0xf]
        %v775 = vld [vmem:[%s5 + $0x90] sm:$0xf]
        %v776 = vld [vmem:[%s5 + $0x94] sm:$0xf]
        %v777 = vld [vmem:[%s5 + $0x98] sm:$0xf]
        %v778 = vld [vmem:[%s5 + $0x9c] sm:$0xf]
        %v779 = vld [vmem:[%s5 + $0xa0] sm:$0xf]
        %v780 = vld [vmem:[%s5 + $0xa4] sm:$0xf]
        %v823 = vunpack.c.l.b16 %v739
        %v824 = vunpack.c.l.b16 %v740
        %v825 = vunpack.c.l.b16 %v741
        %v826 = vunpack.c.l.b16 %v742
        %v827 = vunpack.c.l.b16 %v743
        %v828 = vunpack.c.l.b16 %v744
        %v829 = vunpack.c.l.b16 %v745
        %v830 = vunpack.c.l.b16 %v746
        %v831 = vunpack.c.l.b16 %v747
        %v832 = vunpack.c.l.b16 %v748
        %v833 = vunpack.c.l.b16 %v749
        %v834 = vunpack.c.l.b16 %v750
        %v835 = vunpack.c.l.b16 %v751
        %v836 = vunpack.c.l.b16 %v752
        %v837 = vunpack.c.l.b16 %v753
        %v838 = vunpack.c.l.b16 %v754
        %v839 = vunpack.c.l.b16 %v755
        %v840 = vunpack.c.l.b16 %v756
        %v841 = vunpack.c.l.b16 %v757
        %v842 = vunpack.c.l.b16 %v758
        %v843 = vunpack.c.l.b16 %v759
        %v844 = vunpack.c.l.b16 %v760
        %v845 = vunpack.c.l.b16 %v761
        %v846 = vunpack.c.l.b16 %v762
        %v847 = vunpack.c.l.b16 %v763
        %v848 = vunpack.c.l.b16 %v764
        %v849 = vunpack.c.l.b16 %v765
        %v850 = vunpack.c.l.b16 %v766
        %v851 = vunpack.c.l.b16 %v767
        %v852 = vunpack.c.l.b16 %v768
        %v853 = vunpack.c.l.b16 %v769
        %v854 = vunpack.c.l.b16 %v770
        %v855 = vunpack.c.l.b16 %v771
        %v856 = vunpack.c.l.b16 %v772
        %v857 = vunpack.c.l.b16 %v773
        %v858 = vunpack.c.l.b16 %v774
        %v859 = vunpack.c.l.b16 %v775
        %v860 = vunpack.c.l.b16 %v776
        %v861 = vunpack.c.l.b16 %v777
        %v862 = vunpack.c.l.b16 %v778
        %v863 = vunpack.c.l.b16 %v779
        %v864 = vunpack.c.l.b16 %v780
        %v865 = vpack.c.b16 %v824, %v823
        %v866 = vpack.c.b16 %v826, %v825
        %v867 = vpack.c.b16 %v828, %v827
        %v868 = vpack.c.b16 %v830, %v829
        %v869 = vpack.c.b16 %v832, %v831
        %v870 = vpack.c.b16 %v834, %v833
        %v871 = vpack.c.b16 %v836, %v835
        %v872 = vpack.c.b16 %v838, %v837
        %v873 = vpack.c.b16 %v840, %v839
        %v874 = vpack.c.b16 %v842, %v841
        %v875 = vpack.c.b16 %v844, %v843
        %v876 = vpack.c.b16 %v846, %v845
        %v877 = vpack.c.b16 %v848, %v847
        %v878 = vpack.c.b16 %v850, %v849
        %v879 = vpack.c.b16 %v852, %v851
        %v880 = vpack.c.b16 %v854, %v853
        %v881 = vpack.c.b16 %v856, %v855
        %v882 = vpack.c.b16 %v858, %v857
        %v883 = vpack.c.b16 %v860, %v859
        %v884 = vpack.c.b16 %v862, %v861
        %v885 = vpack.c.b16 %v864, %v863
        %vm907 = vcmask 654336
        %v909 = vsel %vm907, %v738, 0
        %911 = vmatpush.bf16.msra.mxu0 %v872
        %912 = vmatpush.bf16.msra.mxu0 %v871
        %913 = vmatpush.bf16.msra.mxu0 %v870
        %914 = vmatpush.bf16.msra.mxu0 %v869
        %915 = vmatpush.bf16.msra.mxu0 %v868
        %916 = vmatpush.bf16.msra.mxu0 %v867
        %917 = vmatpush.bf16.msra.mxu0 %v866
        %918 = vmatpush.bf16.msra.mxu0 %v865
        %919 = vmatmul.bf16.gmra.mxu0 %v736
        %v920 = vpop.f32.mrf.mxu0
        %v921 = vadd.f32 0.0, %v920
        %v922 = vpop.f32.mrf.mxu0
        %v923 = vadd.f32 0.0, %v922
        %924 = vdwg.mxu0
        %925 = vmatpush.bf16.msra.mxu0 %v880
        %926 = vmatpush.bf16.msra.mxu0 %v879
        %927 = vmatpush.bf16.msra.mxu0 %v878
        %928 = vmatpush.bf16.msra.mxu0 %v877
        %929 = vmatpush.bf16.msra.mxu0 %v876
        %930 = vmatpush.bf16.msra.mxu0 %v875
        %931 = vmatpush.bf16.msra.mxu0 %v874
        %932 = vmatpush.bf16.msra.mxu0 %v873
        %933 = vmatmul.bf16.gmra.mxu0 %v737
        %v934 = vpop.f32.mrf.mxu0
        %v935 = vadd.f32 %v921, %v934
        %v936 = vpop.f32.mrf.mxu0
        %v937 = vadd.f32 %v923, %v936
        %938 = vdwg.mxu0
        %939 = vmatpush.bf16.msra.mxu0 0
        %940 = vmatpush.bf16.msra.mxu0 0
        %941 = vmatpush.bf16.msra.mxu0 0
        %942 = vmatpush.bf16.msra.mxu0 %v885
        %943 = vmatpush.bf16.msra.mxu0 %v884
        %944 = vmatpush.bf16.msra.mxu0 %v883
        %945 = vmatpush.bf16.msra.mxu0 %v882
        %946 = vmatpush.bf16.msra.mxu0 %v881
        %947 = vmatmul.bf16.gmra.mxu0 %v909
        %v948 = vpop.f32.mrf.mxu0
        %v949 = vadd.f32 %v935, %v948
        %v950 = vpop.f32.mrf.mxu0
        %v951 = vadd.f32 %v937, %v950
        %952 = vdwg.mxu0
        %953 = vst [vmem:[%s279] sm:$0xff] %v949
        %954 = vst [vmem:[%s279 + $0x8] sm:$0xff] %v951
        %s955 = sand.u32 %s180, 1
        %s956 = scalar_lea.sflag [#allocation3], %s955
        %s957 = sand.u32 %s180, 1
        %s958 = smul.addr %s957, 16
        %s959 = scalar_lea.vmem [#allocation2], %s958
        // Predicated region
        $region45: #{tpu_custom_call.1} parent=43 // pred_check
          %p960 = pneg %p190
        $region46: #{tpu_custom_call.1} parent=43 // pred_check_branch
          %962 = sbr.rel (%p960) target = $region48
        $region47: #{tpu_custom_call.1} parent=43 // pred_region
          %964 = vsyncadd %s956, 0
          %s965 = smul.addr %s25, 2
          %s966 = smul.addr %s24, 2
          %s967 = sadd.s32 %s965, %s966
          %s968 = smul.addr %s967, 8
          %s969 = scalar_lea.hbm %s6, %s968
          %s970 = sshll.u32 %s959, 4
          %s971 = int_to_ptr.vmem [resolvable:$true] %s970
          %s972 = sshll.u32 %s969, 4
          %s973 = int_to_ptr.hbm [resolvable:$true] %s972
          %978 = dma.vmem_to_hbm [thread:$0]  %s971, 256, %s973, %s956, 128, 128, 8
        $region48: #{tpu_custom_call.1} parent=43 // pred_fallthru
          _
      $region44: #{tpu_custom_call.1} parent=5 // pred_fallthru
        _
      %p979 = scmp.le.s32.totalorder 2, %s15
      // Predicated region
      $region49: #{tpu_custom_call.1} parent=5 // pred_check
        %p980 = pneg %p979
      $region50: #{tpu_custom_call.1} parent=5 // pred_check_branch
        %982 = sbr.rel (%p980) target = $region52
      $region51: #{tpu_custom_call.1} parent=5 // pred_region
        %s983 = ssub.s32 %s15, 2
        // Predicated region
        $region53: #{tpu_custom_call.1} parent=51 // pred_check
          %p984 = pneg %p196
        $region54: #{tpu_custom_call.1} parent=51 // pred_check_branch
          %986 = sbr.rel (%p984) target = $region56
        $region55: #{tpu_custom_call.1} parent=51 // pred_region
          %s987 = sand.u32 %s181, 1
          %s988 = scalar_lea.sflag [#allocation3], %s987
          %s989 = sand.u32 %s181, 1
          %s990 = smul.addr %s989, 16
          %s991 = scalar_lea.vmem [#allocation2], %s990
          %993 = dma.done %s988, 256
        $region56: #{tpu_custom_call.1} parent=51 // pred_fallthru
          _
      $region52: #{tpu_custom_call.1} parent=5 // pred_fallthru
        _
    $region6: #{tpu_custom_call.1} parent=1 // loop_footer
      %s19 = sadd.s32 1, %s15
    $region7: #{tpu_custom_call.1} parent=1 // loop_footer_branch
      %14 = sbr.rel target = $region3
    $region8: #{tpu_custom_call.1} parent=1 // loop_exit
      _
    %994 = vsyncpa [#allocation3], 1
    %s995 = scalar_lea.sflag [#allocation3], 1
    %996 = vsyncpa %s995, 1

// kernel: tpu_custom_call.1
$region0: #{tpu_custom_call.1}
  #allocation0 [shape = 'u32[]', space=smem, size = 0x4, offset = 0x4, fixed_abs, tag = 'smem constant byte address 0x4 - core index']
  #allocation1 [shape = 'u32[72,128]{1,0:T(1,128)}', space=vmem, size = 0x9000, scoped, tag = 'internal scratch']
  %s0 = inlined_call_operand.vmem [shape: f32[2,1,16,128], index: 0, kind: input, shape index: {}]
  %s1 = inlined_call_operand.vmem [shape: f32[1,1,128], index: 1, kind: input, shape index: {}]
  %s2 = inlined_call_operand.vmem [shape: bf16[128,336], index: 2, kind: input, shape index: {}]
  %s3 = inlined_call_operand.vmem [shape: bf16[42,16], index: 3, kind: input, shape index: {}]
  %s4 = inlined_call_operand.vmem [shape: bf16[16,42], index: 4, kind: input, shape index: {}]
  %s5 = inlined_call_operand.vmem [shape: bf16[336,128], index: 5, kind: input, shape index: {}]
  %s6 = inlined_call_operand.hbm [shape: f32[2,1,16,128], index: 6, kind: output, shape index: {}]
  %s7 = sld [smem:[#allocation0]]
  $region57: #{tpu_custom_call.1} parent=0
    _
  %s9 = ssub.s32 1, %s7
  %s10 = scalar_select 0, %s9, %s7
  $region1: #{tpu_custom_call.1} parent=0
    #allocation2 [shape = 'u8[16384]{0}', space=vmem, size = 0x4000, scoped, tag = 'output window, operand 0']
    #allocation3 [shape = 's32[2]{0}', space=sflag, size = 0x8, scoped, tag = 'scoped memory for tpu_custom_call.1']
    %11 = vsyncpa [#allocation3], 0
    %s12 = scalar_lea.sflag [#allocation3], 1
    %13 = vsyncpa %s12, 0
    loop: start=0, step=1, limit=4
    $region2: #{tpu_custom_call.1} parent=1 // loop_pre_header
      _
    $region3: #{tpu_custom_call.1} parent=1 // loop_header
      %s15 = sphi 0, %s19
      %p16 = scmp.ge.s32.totalorder %s15, 4
      %s22 = sphi 0, %s34
      %s23 = sphi 0, %s30
      %s24 = sphi 0, %s22
      %s25 = sphi 0, %s23
      %s26 = sphi 0, %s24
      %s27 = sphi 0, %s25
      %s39 = sphi 0, %s41
      %s42 = sphi 0, %s39
      %s43 = sphi 0, %s42
      %s59 = sphi 0, %s43
      %s65 = sphi 0, %s67
      %s68 = sphi 0, %s65
      %s69 = sphi 0, %s68
      %s85 = sphi 0, %s69
      %s89 = sphi 0, %s89
      %s91 = sphi 0, %s89
      %s92 = sphi 0, %s91
      %s106 = sphi 0, %s92
      %s110 = sphi 0, %s110
      %s112 = sphi 0, %s110
      %s113 = sphi 0, %s112
      %s127 = sphi 0, %s113
      %s131 = sphi 0, %s131
      %s133 = sphi 0, %s131
      %s134 = sphi 0, %s133
      %s148 = sphi 0, %s134
      %s152 = sphi 0, %s152
      %s154 = sphi 0, %s152
      %s155 = sphi 0, %s154
      %s169 = sphi 0, %s155
      %s177 = sphi 0, %s179
      %s180 = sphi 0, %s177
      %s181 = sphi 0, %s180
      %s197 = sphi 0, %s181
    $region4: #{tpu_custom_call.1} parent=1 // loop_header_branch
      %18 = sbr.rel (%p16) target = $region8
    $region5: #{tpu_custom_call.1} parent=1 // loop_body
      %s20 = ssub.s32 %s15, 1
      %s21 = ssub.s32 %s15, 2
      %s28 = sadd.s32 1, %s23
      %p29 = scmp.ge.s32.totalorder %s28, 1
      %s30 = scalar_select %p29, 0, %s28
      %s31 = sadd.s32 1, %s22
      %s32 = scalar_select %p29, %s31, %s22
      %p33 = scmp.ge.s32.totalorder %s32, 2
      %s34 = scalar_select %p33, 0, %s32
      %s35 = ssub.s32 %s22, %s34
      %s36 = ssub.s32 %s23, %s30
      %s37 = sor.u32 %s35, %s36
      %p38 = scmp.eq.s32.totalorder %s37, 0
      %s40 = sadd.s32 %s39, 1
      %s41 = scalar_select %p38, %s39, %s40
      %p44 = pneg %p38
      %p45 = scmp.eq.s32.totalorder %s15, 1
      %p46 = por %p44, %p45
      %p47 = scmp.ne.s32.totalorder %s39, %s42
      %p48 = scmp.eq.s32.totalorder %s15, 0
      %p49 = por %p47, %p48
      %p50 = scmp.ne.s32.totalorder %s39, %s42
      %p51 = scmp.eq.s32.totalorder %s20, 1
      %p52 = por %p50, %p51
      %p53 = scmp.ne.s32.totalorder %s42, %s43
      %p54 = scmp.eq.s32.totalorder %s20, 0
      %p55 = por %p53, %p54
      %p56 = scmp.ne.s32.totalorder %s42, %s43
      %p57 = scmp.eq.s32.totalorder %s21, 1
      %p58 = por %p56, %p57
      %p60 = scmp.ne.s32.totalorder %s43, %s59
      %p61 = scmp.eq.s32.totalorder %s21, 0
      %p62 = por %p60, %p61
      %s63 = ssub.s32 %s23, %s30
      %p64 = scmp.eq.s32.totalorder %s63, 0
      %s66 = sadd.s32 %s65, 1
      %s67 = scalar_select %p64, %s65, %s66
      %p70 = pneg %p64
      %p71 = scmp.eq.s32.totalorder %s15, 1
      %p72 = por %p70, %p71
      %p73 = scmp.ne.s32.totalorder %s65, %s68
      %p74 = scmp.eq.s32.totalorder %s15, 0
      %p75 = por %p73, %p74
      %p76 = scmp.ne.s32.totalorder %s65, %s68
      %p77 = scmp.eq.s32.totalorder %s20, 1
      %p78 = por %p76, %p77
      %p79 = scmp.ne.s32.totalorder %s68, %s69
      %p80 = scmp.eq.s32.totalorder %s20, 0
      %p81 = por %p79, %p80
      %p82 = scmp.ne.s32.totalorder %s68, %s69
      %p83 = scmp.eq.s32.totalorder %s21, 1
      %p84 = por %p82, %p83
      %p86 = scmp.ne.s32.totalorder %s69, %s85
      %p87 = scmp.eq.s32.totalorder %s21, 0
      %p88 = por %p86, %p87
      %s90 = sadd.s32 %s89, 1
      %p93 = scmp.eq.s32.totalorder %s15, 1
      %p94 = scmp.ne.s32.totalorder %s89, %s91
      %p95 = scmp.eq.s32.totalorder %s15, 0
      %p96 = por %p94, %p95
      %p97 = scmp.ne.s32.totalorder %s89, %s91
      %p98 = scmp.eq.s32.totalorder %s20, 1
      %p99 = por %p97, %p98
      %p100 = scmp.ne.s32.totalorder %s91, %s92
      %p101 = scmp.eq.s32.totalorder %s20, 0
      %p102 = por %p100, %p101
      %p103 = scmp.ne.s32.totalorder %s91, %s92
      %p104 = scmp.eq.s32.totalorder %s21, 1
      %p105 = por %p103, %p104
      %p107 = scmp.ne.s32.totalorder %s92, %s106
      %p108 = scmp.eq.s32.totalorder %s21, 0
      %p109 = por %p107, %p108
      %s111 = sadd.s32 %s110, 1
      %p114 = scmp.eq.s32.totalorder %s15, 1
      %p115 = scmp.ne.s32.totalorder %s110, %s112
      %p116 = scmp.eq.s32.totalorder %s15, 0
      %p117 = por %p115, %p116
      %p118 = scmp.ne.s32.totalorder %s110, %s112
      %p119 = scmp.eq.s32.totalorder %s20, 1
      %p120 = por %p118, %p119
      %p121 = scmp.ne.s32.totalorder %s112, %s113
      %p122 = scmp.eq.s32.totalorder %s20, 0
      %p123 = por %p121, %p122
      %p124 = scmp.ne.s32.totalorder %s112, %s113
      %p125 = scmp.eq.s32.totalorder %s21, 1
      %p126 = por %p124, %p125
      %p128 = scmp.ne.s32.totalorder %s113, %s127
      %p129 = scmp.eq.s32.totalorder %s21, 0
      %p130 = por %p128, %p129
      %s132 = sadd.s32 %s131, 1
      %p135 = scmp.eq.s32.totalorder %s15, 1
      %p136 = scmp.ne.s32.totalorder %s131, %s133
      %p137 = scmp.eq.s32.totalorder %s15, 0
      %p138 = por %p136, %p137
      %p139 = scmp.ne.s32.totalorder %s131, %s133
      %p140 = scmp.eq.s32.totalorder %s20, 1
      %p141 = por %p139, %p140
      %p142 = scmp.ne.s32.totalorder %s133, %s134
      %p143 = scmp.eq.s32.totalorder %s20, 0
      %p144 = por %p142, %p143
      %p145 = scmp.ne.s32.totalorder %s133, %s134
      %p146 = scmp.eq.s32.totalorder %s21, 1
      %p147 = por %p145, %p146
      %p149 = scmp.ne.s32.totalorder %s134, %s148
      %p150 = scmp.eq.s32.totalorder %s21, 0
      %p151 = por %p149, %p150
      %s153 = sadd.s32 %s152, 1
      %p156 = scmp.eq.s32.totalorder %s15, 1
      %p157 = scmp.ne.s32.totalorder %s152, %s154
      %p158 = scmp.eq.s32.totalorder %s15, 0
      %p159 = por %p157, %p158
      %p160 = scmp.ne.s32.totalorder %s152, %s154
      %p161 = scmp.eq.s32.totalorder %s20, 1
      %p162 = por %p160, %p161
      %p163 = scmp.ne.s32.totalorder %s154, %s155
      %p164 = scmp.eq.s32.totalorder %s20, 0
      %p165 = por %p163, %p164
      %p166 = scmp.ne.s32.totalorder %s154, %s155
      %p167 = scmp.eq.s32.totalorder %s21, 1
      %p168 = por %p166, %p167
      %p170 = scmp.ne.s32.totalorder %s155, %s169
      %p171 = scmp.eq.s32.totalorder %s21, 0
      %p172 = por %p170, %p171
      %s173 = ssub.s32 %s22, %s34
      %s174 = ssub.s32 %s23, %s30
      %s175 = sor.u32 %s173, %s174
      %p176 = scmp.eq.s32.totalorder %s175, 0
      %s178 = sadd.s32 %s177, 1
      %s179 = scalar_select %p176, %s177, %s178
      %p182 = pneg %p176
      %p183 = scmp.eq.s32.totalorder %s15, 1
      %p184 = por %p182, %p183
      %p185 = scmp.ne.s32.totalorder %s177, %s180
      %p186 = scmp.eq.s32.totalorder %s15, 0
      %p187 = por %p185, %p186
      %p188 = scmp.ne.s32.totalorder %s177, %s180
      %p189 = scmp.eq.s32.totalorder %s20, 1
      %p190 = por %p188, %p189
      %p191 = scmp.ne.s32.totalorder %s180, %s181
      %p192 = scmp.eq.s32.totalorder %s20, 0
      %p193 = por %p191, %p192
      %p194 = scmp.ne.s32.totalorder %s180, %s181
      %p195 = scmp.eq.s32.totalorder %s21, 1
      %p196 = por %p194, %p195
      %p198 = scmp.ne.s32.totalorder %s181, %s197
      %p199 = scmp.eq.s32.totalorder %s21, 0
      %p200 = por %p198, %p199
      %p201 = scmp.le.s32.totalorder 1, %s15
      %p202 = scmp.lt.s32.totalorder %s15, 3
      %p203 = pnand %p201, %p202
      %p204 = pneg %p203
      // Predicated region
      $region9: #{tpu_custom_call.1} parent=5 // pred_check
        _
      $region10: #{tpu_custom_call.1} parent=5 // pred_check_branch
        %206 = sbr.rel (%p203) target = $region12
      $region11: #{tpu_custom_call.1} parent=5 // pred_region
        %s207 = ssub.s32 %s15, 1
        // Predicated region
        $region13: #{tpu_custom_call.1} parent=11 // pred_check
          %p208 = pneg %p81
        $region14: #{tpu_custom_call.1} parent=11 // pred_check_branch
          %210 = sbr.rel (%p208) target = $region16
        $region15: #{tpu_custom_call.1} parent=11 // pred_region
          %p211 = scmp.lt.s32.totalorder %s25, 0
          %s212 = scalar_select %p211, %s25, 0
          %s213 = scalar_lea.vmem %s1, %s212
        $region16: #{tpu_custom_call.1} parent=11 // pred_fallthru
          _
        // Predicated region
        $region17: #{tpu_custom_call.1} parent=11 // pred_check
          %p214 = pneg %p102
        $region18: #{tpu_custom_call.1} parent=11 // pred_check_branch
          %216 = sbr.rel (%p214) target = $region20
        $region19: #{tpu_custom_call.1} parent=11 // pred_region
          _
        $region20: #{tpu_custom_call.1} parent=11 // pred_fallthru
          _
        // Predicated region
        $region21: #{tpu_custom_call.1} parent=11 // pred_check
          %p217 = pneg %p123
        $region22: #{tpu_custom_call.1} parent=11 // pred_check_branch
          %219 = sbr.rel (%p217) target = $region24
        $region23: #{tpu_custom_call.1} parent=11 // pred_region
          _
        $region24: #{tpu_custom_call.1} parent=11 // pred_fallthru
          _
        // Predicated region
        $region25: #{tpu_custom_call.1} parent=11 // pred_check
          %p220 = pneg %p144
        $region26: #{tpu_custom_call.1} parent=11 // pred_check_branch
          %222 = sbr.rel (%p220) target = $region28
        $region27: #{tpu_custom_call.1} parent=11 // pred_region
          _
        $region28: #{tpu_custom_call.1} parent=11 // pred_fallthru
          _
        // Predicated region
        $region29: #{tpu_custom_call.1} parent=11 // pred_check
          %p223 = pneg %p165
        $region30: #{tpu_custom_call.1} parent=11 // pred_check_branch
          %225 = sbr.rel (%p223) target = $region32
        $region31: #{tpu_custom_call.1} parent=11 // pred_region
          _
        $region32: #{tpu_custom_call.1} parent=11 // pred_fallthru
          _
      $region12: #{tpu_custom_call.1} parent=5 // pred_fallthru
        _
      %p226 = scmp.lt.s32.totalorder %s15, 2
      // Predicated region
      $region33: #{tpu_custom_call.1} parent=5 // pred_check
        %p227 = pneg %p226
      $region34: #{tpu_custom_call.1} parent=5 // pred_check_branch
        %229 = sbr.rel (%p227) target = $region36
      $region35: #{tpu_custom_call.1} parent=5 // pred_region
        // Predicated region
        $region37: #{tpu_custom_call.1} parent=35 // pred_check
          %p230 = pneg %p49
        $region38: #{tpu_custom_call.1} parent=35 // pred_check_branch
          %232 = sbr.rel (%p230) target = $region40
        $region39: #{tpu_custom_call.1} parent=35 // pred_region
          %p233 = scmp.lt.s32.totalorder %s22, 1
          %s234 = scalar_select %p233, %s22, 1
          %p235 = scmp.lt.s32.totalorder %s23, 0
          %s236 = scalar_select %p235, %s23, 0
          %s237 = smul.addr %s236, 2
          %s238 = smul.addr %s234, 2
          %s239 = sadd.s32 %s237, %s238
          %s240 = smul.addr %s239, 8
          %s241 = scalar_lea.vmem %s0, %s240
        $region40: #{tpu_custom_call.1} parent=35 // pred_fallthru
          _
      $region36: #{tpu_custom_call.1} parent=5 // pred_fallthru
        _
      %p242 = scmp.le.s32.totalorder 1, %s15
      %p243 = scmp.lt.s32.totalorder %s15, 3
      %p244 = pnand %p242, %p243
      %p245 = pneg %p244
      // Predicated region
      $region41: #{tpu_custom_call.1} parent=5 // pred_check
        _
      $region42: #{tpu_custom_call.1} parent=5 // pred_check_branch
        %247 = sbr.rel (%p244) target = $region44
      $region43: #{tpu_custom_call.1} parent=5 // pred_region
        %s248 = ssub.s32 %s15, 1
        %p249 = scmp.lt.s32.totalorder %s24, 1
        %s250 = scalar_select %p249, %s24, 1
        %p251 = scmp.lt.s32.totalorder %s25, 0
        %s252 = scalar_select %p251, %s25, 0
        %s253 = smul.addr %s252, 2
        %s254 = smul.addr %s250, 2
        %s255 = sadd.s32 %s253, %s254
        %s256 = smul.addr %s255, 8
        %s257 = scalar_lea.vmem %s0, %s256
        %p258 = pneg %p55
        %p259 = pneg %p52
        %p260 = scmp.lt.s32.totalorder %s25, 0
        %s261 = scalar_select %p260, %s25, 0
        %s262 = scalar_lea.vmem %s1, %s261
        %p263 = pneg %p81
        %p264 = pneg %p78
        %p265 = pneg %p102
        %p266 = pneg %p99
        %p267 = pneg %p123
        %p268 = pneg %p120
        %p269 = pneg %p144
        %p270 = pneg %p141
        %p271 = pneg %p165
        %p272 = pneg %p162
        %p273 = pneg %p193
        %p274 = pneg %p190
        %s275 = sand.u32 %s180, 1
        %s276 = scalar_lea.sflag [#allocation3], %s275
        %s277 = sand.u32 %s180, 1
        %s278 = smul.addr %s277, 16
        %s279 = scalar_lea.vmem [#allocation2], %s278
        %p280 = scmp.lt.s32.totalorder %s24, 1
        %s281 = scalar_select %p280, %s24, 1
        %p282 = scmp.lt.s32.totalorder %s25, 0
        %s283 = scalar_select %p282, %s25, 0
        %s284 = smul.addr %s283, 2
        %s285 = smul.addr %s281, 2
        %s286 = sadd.s32 %s284, %s285
        %s287 = smul.addr %s286, 8
        %s288 = scalar_lea.vmem %s0, %s287
        %p289 = scmp.lt.s32.totalorder %s25, 0
        %s290 = scalar_select %p289, %s25, 0
        %s291 = scalar_lea.vmem %s1, %s290
        %v293 = vld [vmem:[%s288] sm:$0xff]
        %v294 = vld [vmem:[%s288 + $0x8] sm:$0xff]
        %v295 = vld [vmem:[%s291] sm:$0x1]
        %v297 = vperm.slane %v295, 0
        %v299 = vadd.f32 %v293, %v297
        %v300 = vadd.f32 %v294, %v297
        %v301 = vpack.c.bf16 %v300, %v299
        %v302 = vld [vmem:[%s2] sm:$0xff]
        %v303 = vld [vmem:[%s2 + $0x8] sm:$0xf]
        %v304 = vld [vmem:[%s2 + $0xc] sm:$0xff]
        %v305 = vld [vmem:[%s2 + $0x14] sm:$0xf]
        %v306 = vld [vmem:[%s2 + $0x18] sm:$0xff]
        %v307 = vld [vmem:[%s2 + $0x20] sm:$0xf]
        %v308 = vld [vmem:[%s2 + $0x24] sm:$0xff]
        %v309 = vld [vmem:[%s2 + $0x2c] sm:$0xf]
        %v310 = vld [vmem:[%s2 + $0x30] sm:$0xff]
        %v311 = vld [vmem:[%s2 + $0x38] sm:$0xf]
        %v312 = vld [vmem:[%s2 + $0x3c] sm:$0xff]
        %v313 = vld [vmem:[%s2 + $0x44] sm:$0xf]
        %v314 = vld [vmem:[%s2 + $0x48] sm:$0xff]
        %v315 = vld [vmem:[%s2 + $0x50] sm:$0xf]
        %v316 = vld [vmem:[%s2 + $0x54] sm:$0xff]
        %v317 = vld [vmem:[%s2 + $0x5c] sm:$0xf]
        %v318 = vld [vmem:[%s2 + $0x60] sm:$0xff]
        %v319 = vld [vmem:[%s2 + $0x68] sm:$0xf]
        %v320 = vld [vmem:[%s2 + $0x6c] sm:$0xff]
        %v321 = vld [vmem:[%s2 + $0x74] sm:$0xf]
        %v322 = vld [vmem:[%s2 + $0x78] sm:$0xff]
        %v323 = vld [vmem:[%s2 + $0x80] sm:$0xf]
        %v324 = vld [vmem:[%s2 + $0x84] sm:$0xff]
        %v325 = vld [vmem:[%s2 + $0x8c] sm:$0xf]
        %v326 = vld [vmem:[%s2 + $0x90] sm:$0xff]
        %v327 = vld [vmem:[%s2 + $0x98] sm:$0xf]
        %v328 = vld [vmem:[%s2 + $0x9c] sm:$0xff]
        %v329 = vld [vmem:[%s2 + $0xa4] sm:$0xf]
        %v330 = vld [vmem:[%s2 + $0xa8] sm:$0xff]
        %v331 = vld [vmem:[%s2 + $0xb0] sm:$0xf]
        %v332 = vld [vmem:[%s2 + $0xb4] sm:$0xff]
        %v333 = vld [vmem:[%s2 + $0xbc] sm:$0xf]
        %v366 = vunpack.c.l.b16 %v302
        %v367 = vunpack.c.h.b16 %v302
        %v368 = vunpack.c.l.b16 %v303
        %v369 = vunpack.c.l.b16 %v304
        %v370 = vunpack.c.h.b16 %v304
        %v371 = vunpack.c.l.b16 %v305
        %v372 = vunpack.c.l.b16 %v306
        %v373 = vunpack.c.h.b16 %v306
        %v374 = vunpack.c.l.b16 %v307
        %v375 = vunpack.c.l.b16 %v308
        %v376 = vunpack.c.h.b16 %v308
        %v377 = vunpack.c.l.b16 %v309
        %v378 = vunpack.c.l.b16 %v310
        %v379 = vunpack.c.h.b16 %v310
        %v380 = vunpack.c.l.b16 %v311
        %v381 = vunpack.c.l.b16 %v312
        %v382 = vunpack.c.h.b16 %v312
        %v383 = vunpack.c.l.b16 %v313
        %v384 = vunpack.c.l.b16 %v314
        %v385 = vunpack.c.h.b16 %v314
        %v386 = vunpack.c.l.b16 %v315
        %v387 = vunpack.c.l.b16 %v316
        %v388 = vunpack.c.h.b16 %v316
        %v389 = vunpack.c.l.b16 %v317
        %v390 = vunpack.c.l.b16 %v318
        %v391 = vunpack.c.h.b16 %v318
        %v392 = vunpack.c.l.b16 %v319
        %v393 = vunpack.c.l.b16 %v320
        %v394 = vunpack.c.h.b16 %v320
        %v395 = vunpack.c.l.b16 %v321
        %v396 = vunpack.c.l.b16 %v322
        %v397 = vunpack.c.h.b16 %v322
        %v398 = vunpack.c.l.b16 %v323
        %v399 = vunpack.c.l.b16 %v324
        %v400 = vunpack.c.h.b16 %v324
        %v401 = vunpack.c.l.b16 %v325
        %v402 = vunpack.c.l.b16 %v326
        %v403 = vunpack.c.h.b16 %v326
        %v404 = vunpack.c.l.b16 %v327
        %v405 = vunpack.c.l.b16 %v328
        %v406 = vunpack.c.h.b16 %v328
        %v407 = vunpack.c.l.b16 %v329
        %v408 = vunpack.c.l.b16 %v330
        %v409 = vunpack.c.h.b16 %v330
        %v410 = vunpack.c.l.b16 %v331
        %v411 = vunpack.c.l.b16 %v332
        %v412 = vunpack.c.h.b16 %v332
        %v413 = vunpack.c.l.b16 %v333
        %v414 = vpack.c.b16 %v369, %v366
        %v415 = vpack.c.b16 %v370, %v367
        %v416 = vpack.c.b16 %v371, %v368
        %v417 = vpack.c.b16 %v375, %v372
        %v418 = vpack.c.b16 %v376, %v373
        %v419 = vpack.c.b16 %v377, %v374
        %v420 = vpack.c.b16 %v381, %v378
        %v421 = vpack.c.b16 %v382, %v379
        %v422 = vpack.c.b16 %v383, %v380
        %v423 = vpack.c.b16 %v387, %v384
        %v424 = vpack.c.b16 %v388, %v385
        %v425 = vpack.c.b16 %v389, %v386
        %v426 = vpack.c.b16 %v393, %v390
        %v427 = vpack.c.b16 %v394, %v391
        %v428 = vpack.c.b16 %v395, %v392
        %v429 = vpack.c.b16 %v399, %v396
        %v430 = vpack.c.b16 %v400, %v397
        %v431 = vpack.c.b16 %v401, %v398
        %v432 = vpack.c.b16 %v405, %v402
        %v433 = vpack.c.b16 %v406, %v403
        %v434 = vpack.c.b16 %v407, %v404
        %v435 = vpack.c.b16 %v411, %v408
        %v436 = vpack.c.b16 %v412, %v409
        %v437 = vpack.c.b16 %v413, %v410
        %462 = vmatpush.bf16.msra.mxu0 %v435
        %463 = vmatpush.bf16.msra.mxu0 %v432
        %464 = vmatpush.bf16.msra.mxu0 %v429
        %465 = vmatpush.bf16.msra.mxu0 %v426
        %466 = vmatpush.bf16.msra.mxu0 %v423
        %467 = vmatpush.bf16.msra.mxu0 %v420
        %468 = vmatpush.bf16.msra.mxu0 %v417
        %469 = vmatpush.bf16.msra.mxu0 %v414
        %470 = vmatmul.bf16.gmra.mxu0 %v301
        %v471 = vpop.f32.mrf.mxu0
        %v472 = vadd.f32 0.0, %v471
        %v473 = vpop.f32.mrf.mxu0
        %v474 = vadd.f32 0.0, %v473
        %475 = vdwg.mxu0
        %476 = vmatpush.bf16.msra.mxu0 %v436
        %477 = vmatpush.bf16.msra.mxu0 %v433
        %478 = vmatpush.bf16.msra.mxu0 %v430
        %479 = vmatpush.bf16.msra.mxu0 %v427
        %480 = vmatpush.bf16.msra.mxu0 %v424
        %481 = vmatpush.bf16.msra.mxu0 %v421
        %482 = vmatpush.bf16.msra.mxu0 %v418
        %483 = vmatpush.bf16.msra.mxu0 %v415
        %484 = vmatmul.bf16.gmra.mxu0 %v301
        %v485 = vpop.f32.mrf.mxu0
        %v486 = vadd.f32 0.0, %v485
        %v487 = vpop.f32.mrf.mxu0
        %v488 = vadd.f32 0.0, %v487
        %489 = vdwg.mxu0
        %490 = vmatpush.bf16.msra.mxu0 %v437
        %491 = vmatpush.bf16.msra.mxu0 %v434
        %492 = vmatpush.bf16.msra.mxu0 %v431
        %493 = vmatpush.bf16.msra.mxu0 %v428
        %494 = vmatpush.bf16.msra.mxu0 %v425
        %495 = vmatpush.bf16.msra.mxu0 %v422
        %496 = vmatpush.bf16.msra.mxu0 %v419
        %497 = vmatpush.bf16.msra.mxu0 %v416
        %498 = vmatmul.bf16.gmra.mxu0 %v301
        %v499 = vpop.f32.mrf.mxu0
        %v500 = vadd.f32 0.0, %v499
        %v501 = vpop.f32.mrf.mxu0
        %v502 = vadd.f32 0.0, %v501
        %503 = vdwg.mxu0
        %v504 = vld [vmem:[%s3] sm:$0xf]
        %v505 = vld [vmem:[%s3 + $0x4] sm:$0xf]
        %v506 = vld [vmem:[%s3 + $0x8] sm:$0xf]
        %v507 = vld [vmem:[%s3 + $0xc] sm:$0xf]
        %v508 = vld [vmem:[%s3 + $0x10] sm:$0xf]
        %v509 = vld [vmem:[%s3 + $0x14] sm:$0x1]
        %v510 = vpack.c.bf16 %v474, %v472
        %v511 = vpack.c.bf16 %v488, %v486
        %v512 = vpack.c.bf16 %v502, %v500
        %v519 = vunpack.c.l.b16 %v504
        %v520 = vunpack.c.l.b16 %v505
        %v521 = vunpack.c.l.b16 %v506
        %v522 = vunpack.c.l.b16 %v507
        %v523 = vunpack.c.l.b16 %v508
        %v524 = vunpack.c.l.b16 %v509
        %v525 = vpack.c.b16 %v520, %v519
        %v526 = vpack.c.b16 %v522, %v521
        %v527 = vpack.c.b16 %v524, %v523
        %vm528 = vcmask 130048
        %v530 = vsel %vm528, %v525, 0
        %v533 = vsel %vm528, %v526, 0
        %v536 = vsel %vm528, %v527, 0
        %538 = vmatpush.bf16.msra.mxu0 0
        %539 = vmatpush.bf16.msra.mxu0 0
        %540 = vmatpush.bf16.msra.mxu0 0
        %541 = vmatpush.bf16.msra.mxu0 0
        %542 = vmatpush.bf16.msra.mxu0 0
        %543 = vmatpush.bf16.msra.mxu0 0
        %544 = vmatpush.bf16.msra.mxu0 0
        %545 = vmatpush.bf16.msra.mxu0 %v510
        %546 = vmatmul.bf16.gmra.mxu0 %v530
        %v547 = vpop.f32.mrf.mxu0
        %v548 = vadd.f32 0.0, %v547
        %v549 = vpop.f32.mrf.mxu0
        %v550 = vadd.f32 0.0, %v549
        %551 = vmatmul.bf16.gmra.mxu0 %v533
        %v552 = vpop.f32.mrf.mxu0
        %v553 = vadd.f32 0.0, %v552
        %v554 = vpop.f32.mrf.mxu0
        %v555 = vadd.f32 0.0, %v554
        %556 = vmatmul.bf16.gmra.mxu0 %v536
        %v557 = vpop.f32.mrf.mxu0
        %v558 = vadd.f32 0.0, %v557
        %v559 = vpop.f32.mrf.mxu0
        %v560 = vadd.f32 0.0, %v559
        %561 = vdwg.mxu0
        %562 = vmatpush.bf16.msra.mxu0 0
        %563 = vmatpush.bf16.msra.mxu0 0
        %564 = vmatpush.bf16.msra.mxu0 0
        %565 = vmatpush.bf16.msra.mxu0 0
        %566 = vmatpush.bf16.msra.mxu0 0
        %567 = vmatpush.bf16.msra.mxu0 0
        %568 = vmatpush.bf16.msra.mxu0 0
        %569 = vmatpush.bf16.msra.mxu0 %v511
        %570 = vmatmul.bf16.gmra.mxu0 %v530
        %v571 = vpop.f32.mrf.mxu0
        %v572 = vadd.f32 0.0, %v571
        %v573 = vpop.f32.mrf.mxu0
        %v574 = vadd.f32 0.0, %v573
        %575 = vmatmul.bf16.gmra.mxu0 %v533
        %v576 = vpop.f32.mrf.mxu0
        %v577 = vadd.f32 0.0, %v576
        %v578 = vpop.f32.mrf.mxu0
        %v579 = vadd.f32 0.0, %v578
        %580 = vmatmul.bf16.gmra.mxu0 %v536
        %v581 = vpop.f32.mrf.mxu0
        %v582 = vadd.f32 0.0, %v581
        %v583 = vpop.f32.mrf.mxu0
        %v584 = vadd.f32 0.0, %v583
        %585 = vdwg.mxu0
        %586 = vmatpush.bf16.msra.mxu0 0
        %587 = vmatpush.bf16.msra.mxu0 0
        %588 = vmatpush.bf16.msra.mxu0 0
        %589 = vmatpush.bf16.msra.mxu0 0
        %590 = vmatpush.bf16.msra.mxu0 0
        %591 = vmatpush.bf16.msra.mxu0 0
        %592 = vmatpush.bf16.msra.mxu0 0
        %593 = vmatpush.bf16.msra.mxu0 %v512
        %594 = vmatmul.bf16.gmra.mxu0 %v530
        %v595 = vpop.f32.mrf.mxu0
        %v596 = vadd.f32 0.0, %v595
        %v597 = vpop.f32.mrf.mxu0
        %v598 = vadd.f32 0.0, %v597
        %599 = vmatmul.bf16.gmra.mxu0 %v533
        %v600 = vpop.f32.mrf.mxu0
        %v601 = vadd.f32 0.0, %v600
        %v602 = vpop.f32.mrf.mxu0
        %v603 = vadd.f32 0.0, %v602
        %604 = vmatmul.bf16.gmra.mxu0 %v536
        %v605 = vpop.f32.mrf.mxu0
        %v606 = vadd.f32 0.0, %v605
        %v607 = vpop.f32.mrf.mxu0
        %v608 = vadd.f32 0.0, %v607
        %609 = vdwg.mxu0
        %vm610 = vcmp.ge.f32.partialorder %v548, 0.0
        %vm611 = vcmp.ge.f32.partialorder %v572, 0.0
        %vm612 = vcmp.ge.f32.partialorder %v596, 0.0
        %vm613 = vcmp.ge.f32.partialorder %v550, 0.0
        %vm614 = vcmp.ge.f32.partialorder %v574, 0.0
        %vm615 = vcmp.ge.f32.partialorder %v598, 0.0
        %vm616 = vcmp.ge.f32.partialorder %v553, 0.0
        %vm617 = vcmp.ge.f32.partialorder %v577, 0.0
        %vm618 = vcmp.ge.f32.partialorder %v601, 0.0
        %vm619 = vcmp.ge.f32.partialorder %v555, 0.0
        %vm620 = vcmp.ge.f32.partialorder %v579, 0.0
        %vm621 = vcmp.ge.f32.partialorder %v603, 0.0
        %vm622 = vcmp.ge.f32.partialorder %v558, 0.0
        %vm623 = vcmp.ge.f32.partialorder %v582, 0.0
        %vm624 = vcmp.ge.f32.partialorder %v606, 0.0
        %vm625 = vcmp.ge.f32.partialorder %v560, 0.0
        %vm626 = vcmp.ge.f32.partialorder %v584, 0.0
        %vm627 = vcmp.ge.f32.partialorder %v608, 0.0
        %v628 = vmul.f32 %v548, 0.2
        %v629 = vmul.f32 %v572, 0.2
        %v630 = vmul.f32 %v596, 0.2
        %v631 = vmul.f32 %v550, 0.2
        %v632 = vmul.f32 %v574, 0.2
        %v633 = vmul.f32 %v598, 0.2
        %v634 = vmul.f32 %v553, 0.2
        %v635 = vmul.f32 %v577, 0.2
        %v636 = vmul.f32 %v601, 0.2
        %v637 = vmul.f32 %v555, 0.2
        %v638 = vmul.f32 %v579, 0.2
        %v639 = vmul.f32 %v603, 0.2
        %v640 = vmul.f32 %v558, 0.2
        %v641 = vmul.f32 %v582, 0.2
        %v642 = vmul.f32 %v606, 0.2
        %v643 = vmul.f32 %v560, 0.2
        %v644 = vmul.f32 %v584, 0.2
        %v645 = vmul.f32 %v608, 0.2
        %v646 = vsel %vm610, %v548, %v628
        %v647 = vsel %vm611, %v572, %v629
        %v648 = vsel %vm612, %v596, %v630
        %v649 = vsel %vm613, %v550, %v631
        %v650 = vsel %vm614, %v574, %v632
        %v651 = vsel %vm615, %v598, %v633
        %v652 = vsel %vm616, %v553, %v634
        %v653 = vsel %vm617, %v577, %v635
        %v654 = vsel %vm618, %v601, %v636
        %v655 = vsel %vm619, %v555, %v637
        %v656 = vsel %vm620, %v579, %v638
        %v657 = vsel %vm621, %v603, %v639
        %v658 = vsel %vm622, %v558, %v640
        %v659 = vsel %vm623, %v582, %v641
        %v660 = vsel %vm624, %v606, %v642
        %v661 = vsel %vm625, %v560, %v643
        %v662 = vsel %vm626, %v584, %v644
        %v663 = vsel %vm627, %v608, %v645
        %v664 = vld [vmem:[%s4] sm:$0xf]
        %v665 = vld [vmem:[%s4 + $0x4] sm:$0xf]
        %v666 = vpack.c.bf16 %v649, %v646
        %v667 = vpack.c.bf16 %v650, %v647
        %v668 = vpack.c.bf16 %v651, %v648
        %v669 = vpack.c.bf16 %v655, %v652
        %v670 = vpack.c.bf16 %v656, %v653
        %v671 = vpack.c.bf16 %v657, %v654
        %v672 = vpack.c.bf16 %v661, %v658
        %v673 = vpack.c.bf16 %v662, %v659
        %v674 = vpack.c.bf16 %v663, %v660
        %v677 = vunpack.c.l.b16 %v664
        %v678 = vunpack.c.l.b16 %v665
        %v679 = vpack.c.b16 %v678, %v677
        %vm680 = vcmask 343040
        %v682 = vsel %vm680, %v679, 0
        %vm684 = vcmask 1044480
        %v686 = vsel %vm684, %v672, 0
        %v689 = vsel %vm684, %v673, 0
        %v692 = vsel %vm684, %v674, 0
        %694 = vmatpush.bf16.msra.mxu0 0
        %695 = vmatpush.bf16.msra.mxu0 0
        %696 = vmatpush.bf16.msra.mxu0 0
        %697 = vmatpush.bf16.msra.mxu0 0
        %698 = vmatpush.bf16.msra.mxu0 0
        %699 = vmatpush.bf16.msra.mxu0 %v686
        %700 = vmatpush.bf16.msra.mxu0 %v669
        %701 = vmatpush.bf16.msra.mxu0 %v666
        %702 = vmatmul.bf16.gmra.mxu0 %v682
        %v703 = vpop.f32.mrf.mxu0
        %v704 = vadd.f32 0.0, %v703
        %v705 = vpop.f32.mrf.mxu0
        %v706 = vadd.f32 0.0, %v705
        %707 = vdwg.mxu0
        %708 = vmatpush.bf16.msra.mxu0 0
        %709 = vmatpush.bf16.msra.mxu0 0
        %710 = vmatpush.bf16.msra.mxu0 0
        %711 = vmatpush.bf16.msra.mxu0 0
        %712 = vmatpush.bf16.msra.mxu0 0
        %713 = vmatpush.bf16.msra.mxu0 %v689
        %714 = vmatpush.bf16.msra.mxu0 %v670
        %715 = vmatpush.bf16.msra.mxu0 %v667
        %716 = vmatmul.bf16.gmra.mxu0 %v682
        %v717 = vpop.f32.mrf.mxu0
        %v718 = vadd.f32 0.0, %v717
        %v719 = vpop.f32.mrf.mxu0
        %v720 = vadd.f32 0.0, %v719
        %721 = vdwg.mxu0
        %722 = vmatpush.bf16.msra.mxu0 0
        %723 = vmatpush.bf16.msra.mxu0 0
        %724 = vmatpush.bf16.msra.mxu0 0
        %725 = vmatpush.bf16.msra.mxu0 0
        %726 = vmatpush.bf16.msra.mxu0 0
        %727 = vmatpush.bf16.msra.mxu0 %v692
        %728 = vmatpush.bf16.msra.mxu0 %v671
        %729 = vmatpush.bf16.msra.mxu0 %v668
        %730 = vmatmul.bf16.gmra.mxu0 %v682
        %v731 = vpop.f32.mrf.mxu0
        %v732 = vadd.f32 0.0, %v731
        %v733 = vpop.f32.mrf.mxu0
        %v734 = vadd.f32 0.0, %v733
        %735 = vdwg.mxu0
        %v736 = vpack.c.bf16 %v706, %v704
        %v737 = vpack.c.bf16 %v720, %v718
        %v738 = vpack.c.bf16 %v734, %v732
        %v739 = vld [vmem:[%s5] sm:$0xf]
        %v740 = vld [vmem:[%s5 + $0x4] sm:$0xf]
        %v741 = vld [vmem:[%s5 + $0x8] sm:$0xf]
        %v742 = vld [vmem:[%s5 + $0xc] sm:$0xf]
        %v743 = vld [vmem:[%s5 + $0x10] sm:$0xf]
        %v744 = vld [vmem:[%s5 + $0x14] sm:$0xf]
        %v745 = vld [vmem:[%s5 + $0x18] sm:$0xf]
        %v746 = vld [vmem:[%s5 + $0x1c] sm:$0xf]
        %v747 = vld [vmem:[%s5 + $0x20] sm:$0xf]
        %v748 = vld [vmem:[%s5 + $0x24] sm:$0xf]
        %v749 = vld [vmem:[%s5 + $0x28] sm:$0xf]
        %v750 = vld [vmem:[%s5 + $0x2c] sm:$0xf]
        %v751 = vld [vmem:[%s5 + $0x30] sm:$0xf]
        %v752 = vld [vmem:[%s5 + $0x34] sm:$0xf]
        %v753 = vld [vmem:[%s5 + $0x38] sm:$0xf]
        %v754 = vld [vmem:[%s5 + $0x3c] sm:$0xf]
        %v755 = vld [vmem:[%s5 + $0x40] sm:$0xf]
        %v756 = vld [vmem:[%s5 + $0x44] sm:$0xf]
        %v757 = vld [vmem:[%s5 + $0x48] sm:$0xf]
        %v758 = vld [vmem:[%s5 + $0x4c] sm:$0xf]
        %v759 = vld [vmem:[%s5 + $0x50] sm:$0xf]
        %v760 = vld [vmem:[%s5 + $0x54] sm:$0xf]
        %v761 = vld [vmem:[%s5 + $0x58] sm:$0xf]
        %v762 = vld [vmem:[%s5 + $0x5c] sm:$0xf]
        %v763 = vld [vmem:[%s5 + $0x60] sm:$0xf]
        %v764 = vld [vmem:[%s5 + $0x64] sm:$0xf]
        %v765 = vld [vmem:[%s5 + $0x68] sm:$0xf]
        %v766 = vld [vmem:[%s5 + $0x6c] sm:$0xf]
        %v767 = vld [vmem:[%s5 + $0x70] sm:$0xf]
        %v768 = vld [vmem:[%s5 + $0x74] sm:$0xf]
        %v769 = vld [vmem:[%s5 + $0x78] sm:$0xf]
        %v770 = vld [vmem:[%s5 + $0x7c] sm:$0xf]
        %v771 = vld [vmem:[%s5 + $0x80] sm:$0xf]
        %v772 = vld [vmem:[%s5 + $0x84] sm:$0xf]
        %v773 = vld [vmem:[%s5 + $0x88] sm:$0xf]
        %v774 = vld [vmem:[%s5 + $0x8c] sm:$0xf]
        %v775 = vld [vmem:[%s5 + $0x90] sm:$0xf]
        %v776 = vld [vmem:[%s5 + $0x94] sm:$0xf]
        %v777 = vld [vmem:[%s5 + $0x98] sm:$0xf]
        %v778 = vld [vmem:[%s5 + $0x9c] sm:$0xf]
        %v779 = vld [vmem:[%s5 + $0xa0] sm:$0xf]
        %v780 = vld [vmem:[%s5 + $0xa4] sm:$0xf]
        %v823 = vunpack.c.l.b16 %v739
        %v824 = vunpack.c.l.b16 %v740
        %v825 = vunpack.c.l.b16 %v741
        %v826 = vunpack.c.l.b16 %v742
        %v827 = vunpack.c.l.b16 %v743
        %v828 = vunpack.c.l.b16 %v744
        %v829 = vunpack.c.l.b16 %v745
        %v830 = vunpack.c.l.b16 %v746
        %v831 = vunpack.c.l.b16 %v747
        %v832 = vunpack.c.l.b16 %v748
        %v833 = vunpack.c.l.b16 %v749
        %v834 = vunpack.c.l.b16 %v750
        %v835 = vunpack.c.l.b16 %v751
        %v836 = vunpack.c.l.b16 %v752
        %v837 = vunpack.c.l.b16 %v753
        %v838 = vunpack.c.l.b16 %v754
        %v839 = vunpack.c.l.b16 %v755
        %v840 = vunpack.c.l.b16 %v756
        %v841 = vunpack.c.l.b16 %v757
        %v842 = vunpack.c.l.b16 %v758
        %v843 = vunpack.c.l.b16 %v759
        %v844 = vunpack.c.l.b16 %v760
        %v845 = vunpack.c.l.b16 %v761
        %v846 = vunpack.c.l.b16 %v762
        %v847 = vunpack.c.l.b16 %v763
        %v848 = vunpack.c.l.b16 %v764
        %v849 = vunpack.c.l.b16 %v765
        %v850 = vunpack.c.l.b16 %v766
        %v851 = vunpack.c.l.b16 %v767
        %v852 = vunpack.c.l.b16 %v768
        %v853 = vunpack.c.l.b16 %v769
        %v854 = vunpack.c.l.b16 %v770
        %v855 = vunpack.c.l.b16 %v771
        %v856 = vunpack.c.l.b16 %v772
        %v857 = vunpack.c.l.b16 %v773
        %v858 = vunpack.c.l.b16 %v774
        %v859 = vunpack.c.l.b16 %v775
        %v860 = vunpack.c.l.b16 %v776
        %v861 = vunpack.c.l.b16 %v777
        %v862 = vunpack.c.l.b16 %v778
        %v863 = vunpack.c.l.b16 %v779
        %v864 = vunpack.c.l.b16 %v780
        %v865 = vpack.c.b16 %v824, %v823
        %v866 = vpack.c.b16 %v826, %v825
        %v867 = vpack.c.b16 %v828, %v827
        %v868 = vpack.c.b16 %v830, %v829
        %v869 = vpack.c.b16 %v832, %v831
        %v870 = vpack.c.b16 %v834, %v833
        %v871 = vpack.c.b16 %v836, %v835
        %v872 = vpack.c.b16 %v838, %v837
        %v873 = vpack.c.b16 %v840, %v839
        %v874 = vpack.c.b16 %v842, %v841
        %v875 = vpack.c.b16 %v844, %v843
        %v876 = vpack.c.b16 %v846, %v845
        %v877 = vpack.c.b16 %v848, %v847
        %v878 = vpack.c.b16 %v850, %v849
        %v879 = vpack.c.b16 %v852, %v851
        %v880 = vpack.c.b16 %v854, %v853
        %v881 = vpack.c.b16 %v856, %v855
        %v882 = vpack.c.b16 %v858, %v857
        %v883 = vpack.c.b16 %v860, %v859
        %v884 = vpack.c.b16 %v862, %v861
        %v885 = vpack.c.b16 %v864, %v863
        %vm907 = vcmask 654336
        %v909 = vsel %vm907, %v738, 0
        %911 = vmatpush.bf16.msra.mxu0 %v872
        %912 = vmatpush.bf16.msra.mxu0 %v871
        %913 = vmatpush.bf16.msra.mxu0 %v870
        %914 = vmatpush.bf16.msra.mxu0 %v869
        %915 = vmatpush.bf16.msra.mxu0 %v868
        %916 = vmatpush.bf16.msra.mxu0 %v867
        %917 = vmatpush.bf16.msra.mxu0 %v866
        %918 = vmatpush.bf16.msra.mxu0 %v865
        %919 = vmatmul.bf16.gmra.mxu0 %v736
        %v920 = vpop.f32.mrf.mxu0
        %v921 = vadd.f32 0.0, %v920
        %v922 = vpop.f32.mrf.mxu0
        %v923 = vadd.f32 0.0, %v922
        %924 = vdwg.mxu0
        %925 = vmatpush.bf16.msra.mxu0 %v880
        %926 = vmatpush.bf16.msra.mxu0 %v879
        %927 = vmatpush.bf16.msra.mxu0 %v878
        %928 = vmatpush.bf16.msra.mxu0 %v877
        %929 = vmatpush.bf16.msra.mxu0 %v876
        %930 = vmatpush.bf16.msra.mxu0 %v875
        %931 = vmatpush.bf16.msra.mxu0 %v874
        %932 = vmatpush.bf16.msra.mxu0 %v873
        %933 = vmatmul.bf16.gmra.mxu0 %v737
        %v934 = vpop.f32.mrf.mxu0
        %v935 = vadd.f32 %v921, %v934
        %v936 = vpop.f32.mrf.mxu0
        %v937 = vadd.f32 %v923, %v936
        %938 = vdwg.mxu0
        %939 = vmatpush.bf16.msra.mxu0 0
        %940 = vmatpush.bf16.msra.mxu0 0
        %941 = vmatpush.bf16.msra.mxu0 0
        %942 = vmatpush.bf16.msra.mxu0 %v885
        %943 = vmatpush.bf16.msra.mxu0 %v884
        %944 = vmatpush.bf16.msra.mxu0 %v883
        %945 = vmatpush.bf16.msra.mxu0 %v882
        %946 = vmatpush.bf16.msra.mxu0 %v881
        %947 = vmatmul.bf16.gmra.mxu0 %v909
        %v948 = vpop.f32.mrf.mxu0
        %v949 = vadd.f32 %v935, %v948
        %v950 = vpop.f32.mrf.mxu0
        %v951 = vadd.f32 %v937, %v950
        %952 = vdwg.mxu0
        %953 = vst [vmem:[%s279] sm:$0xff] %v949
        %954 = vst [vmem:[%s279 + $0x8] sm:$0xff] %v951
        %s955 = sand.u32 %s180, 1
        %s956 = scalar_lea.sflag [#allocation3], %s955
        %s957 = sand.u32 %s180, 1
        %s958 = smul.addr %s957, 16
        %s959 = scalar_lea.vmem [#allocation2], %s958
        // Predicated region
        $region45: #{tpu_custom_call.1} parent=43 // pred_check
          %p960 = pneg %p190
        $region46: #{tpu_custom_call.1} parent=43 // pred_check_branch
          %962 = sbr.rel (%p960) target = $region48
        $region47: #{tpu_custom_call.1} parent=43 // pred_region
          %964 = vsyncadd %s956, 0
          %s965 = smul.addr %s25, 2
          %s966 = smul.addr %s24, 2
          %s967 = sadd.s32 %s965, %s966
          %s968 = smul.addr %s967, 8
          %s969 = scalar_lea.hbm %s6, %s968
          %s970 = sshll.u32 %s959, 4
          %s971 = int_to_ptr.vmem [resolvable:$true] %s970
          %s972 = sshll.u32 %s969, 4
          %s973 = int_to_ptr.hbm [resolvable:$true] %s972
          %978 = dma.vmem_to_hbm [thread:$0]  %s971, 256, %s973, %s956, 128, 128, 8
        $region48: #{tpu_custom_call.1} parent=43 // pred_fallthru
          _
      $region44: #{tpu_custom_call.1} parent=5 // pred_fallthru
        _
      %p979 = scmp.le.s32.totalorder 2, %s15
      // Predicated region
      $region49: #{tpu_custom_call.1} parent=5 // pred_check
        %p980 = pneg %p979
      $region50: #{tpu_custom_call.1} parent=5 // pred_check_branch
        %982 = sbr.rel (%p980) target = $region52
      $region51: #{tpu_custom_call.1} parent=5 // pred_region
        %s983 = ssub.s32 %s15, 2
        // Predicated region
        $region53: #{tpu_custom_call.1} parent=51 // pred_check
          %p984 = pneg %p196
        $region54: #{tpu_custom_call.1} parent=51 // pred_check_branch
          %986 = sbr.rel (%p984) target = $region56
        $region55: #{tpu_custom_call.1} parent=51 // pred_region
          %s987 = sand.u32 %s181, 1
          %s988 = scalar_lea.sflag [#allocation3], %s987
          %s989 = sand.u32 %s181, 1
          %s990 = smul.addr %s989, 16
          %s991 = scalar_lea.vmem [#allocation2], %s990
          %993 = dma.done %s988, 256
        $region56: #{tpu_custom_call.1} parent=51 // pred_fallthru
          _
      $region52: #{tpu_custom_call.1} parent=5 // pred_fallthru
        _
    $region6: #{tpu_custom_call.1} parent=1 // loop_footer
      %s19 = sadd.s32 1, %s15
    $region7: #{tpu_custom_call.1} parent=1 // loop_footer_branch
      %14 = sbr.rel target = $region3
    $region8: #{tpu_custom_call.1} parent=1 // loop_exit
      _
    %994 = vsyncpa [#allocation3], 1
    %s995 = scalar_lea.sflag [#allocation3], 1
    %996 = vsyncpa %s995, 1

</llo_original>
